<compile_context>
chip_gen: v6e
topology: v6e:2x2x1
jax: 0.10.0
libtpu: 0.0.40
codegen_flags: <defaults>
</compile_context>

<pallas_src>
import functools

import jax
import jax.numpy as jnp
from jax.experimental import pallas as pl
from jax.experimental.pallas import tpu as pltpu


# --------------------------------------------------------------------------
# Kernels
# --------------------------------------------------------------------------

def _xw_kernel(x_ref, w_ref, d_ref, o_ref):
    # Y tile = d_row * (X @ W), emitted in bf16 for the bandwidth-dominant
    # second matmul (single bf16 rounding in the whole pipeline).
    xw = jnp.dot(x_ref[...], w_ref[...], preferred_element_type=jnp.float32)
    o_ref[...] = (d_ref[...] * xw).astype(o_ref.dtype)


def _gcn_kernel_resident_y(a_ref, y_ref, d_ref, b_ref, alpha_ref, o_ref):
    """Main loop with the whole Y slab resident in VMEM (small/medium N)."""
    i = pl.program_id(0)
    k = pl.program_id(1)
    tm, tk = a_ref.shape

    @pl.when(k == 0)
    def _():
        o_ref[...] = jnp.zeros_like(o_ref)

    # Raw 0/1 adjacency: int8 HBM stream -> one VPU cast -> MXU.
    a = a_ref[...].astype(jnp.bfloat16)
    y_k = y_ref[pl.ds(pl.multiple_of(k * tk, tk), tk), :]
    o_ref[...] += jnp.dot(a, y_k, preferred_element_type=jnp.float32)

    @pl.when(k == pl.num_programs(1) - 1)
    def _():
        # Self-loop (= + Y_i) and row normalization in f32 at finalize.
        y_i = y_ref[pl.ds(pl.multiple_of(i * tm, tm), tm), :].astype(jnp.float32)
        h = d_ref[...] * (o_ref[...] + y_i) + b_ref[...]
        alpha = alpha_ref[0]
        o_ref[...] = jnp.where(h > 0, h, alpha * h)


def _gcn_kernel_streamed_y(a_ref, yk_ref, yi_ref, d_ref, b_ref, alpha_ref, o_ref):
    """Main loop with Y streamed per k tile (large N where Y won't fit VMEM)."""
    k = pl.program_id(1)

    @pl.when(k == 0)
    def _():
        o_ref[...] = jnp.zeros_like(o_ref)

    a = a_ref[...].astype(jnp.bfloat16)
    o_ref[...] += jnp.dot(a, yk_ref[...], preferred_element_type=jnp.float32)

    @pl.when(k == pl.num_programs(1) - 1)
    def _():
        h = d_ref[...] * (o_ref[...] + yi_ref[...].astype(jnp.float32)) + b_ref[...]
        alpha = alpha_ref[0]
        o_ref[...] = jnp.where(h > 0, h, alpha * h)


# --------------------------------------------------------------------------
# Wrapper
# --------------------------------------------------------------------------

def _round_up(x, m):
    return (x + m - 1) // m * m


def gcn_forward(seq, adj, weight, bias, prelu_weight,
                *, tm=None, tk=None, y_resident=None):
    """seq: (N, F_in), adj: (N, N) dense 0/1 (zero diagonal; self-loops are
    added here, matching GCNConv), weight: (F_in, F_out), bias: (F_out,),
    prelu_weight: scalar. Returns (N, F_out) float32."""
    n, f_in = seq.shape
    f_out = weight.shape[1]

    # ---- tile selection first, then pad N up to it (no 128-tile fallback) --
    if tm is None:
        tm = 128 if n <= 256 else (256 if n <= 1024 else 512)
    n_pad = _round_up(n, 2 * tm)          # even row-tile count (v7x dual-TC)
    if tk is None:
        if n_pad <= 4096:
            tk = n_pad                    # whole strip: k axis collapses to 1
        else:
            tk = 2048 if n_pad % 2048 == 0 else 1024
    assert n_pad % tm == 0 and n_pad % tk == 0
    f_pad = _round_up(max(f_out, 128), 128)   # lane-dense output / weights

    if y_resident is None:
        # Keep the whole bf16 Y slab in VMEM when it is comfortably small
        # (fits v5e/v6e/v7x scoped-VMEM defaults next to the A double-buffer).
        y_resident = n_pad * f_pad * 2 <= 4 * 1024 * 1024

    f32 = jnp.float32

    # ---- padded operands (zero padding is exact: padded rows of X are zero,
    #      so padded rows of Y are zero and padded A columns contribute 0) ---
    x = jnp.zeros((n_pad, f_in), f32).at[:n, :].set(seq.astype(f32))
    a_i8 = jnp.zeros((n_pad, n_pad), jnp.int8).at[:n, :n].set(
        adj.astype(jnp.int8))                     # raw 0/1 adjacency, 1 B/elem
    w = jnp.zeros((f_in, f_pad), f32).at[:, :f_out].set(weight.astype(f32))
    b = jnp.zeros((1, f_pad), f32).at[0, :f_out].set(bias.astype(f32))
    alpha = jnp.asarray(prelu_weight, f32).reshape((1,))

    # ---- O(N) glue: degree with self-loop, read from the 1-byte copy -------
    deg = jnp.sum(a_i8.astype(f32), axis=1) + 1.0     # padded rows -> deg = 1
    d = jax.lax.rsqrt(deg).reshape(n_pad, 1)          # D^{-1/2}, no NaNs

    # ---- Y = D^{-1/2} (X @ W)  (hoisted, row-scaled, bf16) ------------------
    y = pl.pallas_call(
        _xw_kernel,
        out_shape=jax.ShapeDtypeStruct((n_pad, f_pad), jnp.bfloat16),
        grid=(n_pad // tm,),
        in_specs=[
            pl.BlockSpec((tm, f_in), lambda i: (i, 0)),
            pl.BlockSpec((f_in, f_pad), lambda i: (0, 0)),
            pl.BlockSpec((tm, 1), lambda i: (i, 0)),
        ],
        out_specs=pl.BlockSpec((tm, f_pad), lambda i: (i, 0)),
        compiler_params=pltpu.CompilerParams(
            dimension_semantics=("parallel",)),
    )(x, w, d)

    # ---- main kernel: (A + I) normalized matmul + bias + PReLU -------------
    grid = (n_pad // tm, n_pad // tk)
    a_spec = pl.BlockSpec((tm, tk), lambda i, k: (i, k))     # int8 adjacency
    tail_specs = [
        pl.BlockSpec((tm, 1), lambda i, k: (i, 0)),          # d_row (f32)
        pl.BlockSpec((1, f_pad), lambda i, k: (0, 0)),       # bias
        pl.BlockSpec(memory_space=pltpu.MemorySpace.SMEM),    # PReLU slope
    ]
    if y_resident:
        kernel = _gcn_kernel_resident_y
        y_specs = [pl.BlockSpec((n_pad, f_pad), lambda i, k: (0, 0))]
        y_args = (y,)
    else:
        kernel = _gcn_kernel_streamed_y
        y_specs = [pl.BlockSpec((tk, f_pad), lambda i, k: (k, 0)),
                   pl.BlockSpec((tm, f_pad), lambda i, k: (i, 0))]
        y_args = (y, y)

    out_pad = pl.pallas_call(
        kernel,
        out_shape=jax.ShapeDtypeStruct((n_pad, f_pad), jnp.float32),
        grid=grid,
        in_specs=[a_spec] + y_specs + tail_specs,
        out_specs=pl.BlockSpec((tm, f_pad), lambda i, k: (i, 0)),
        compiler_params=pltpu.CompilerParams(
            dimension_semantics=("parallel", "arbitrary")),
    )(a_i8, *y_args, d, b, alpha)

    return out_pad[:n, :f_out]


def init_params(key, in_ft, out_ft):
    """Deterministic init matching GCNConv.reset_parameters + PReLU(0.25)."""
    limit = jnp.sqrt(6.0 / (in_ft + out_ft))       # glorot / xavier uniform
    w = jax.random.uniform(key, (in_ft, out_ft), jnp.float32, -limit, limit)
    b = jnp.zeros((out_ft,), jnp.float32)          # GCNConv zeros its bias
    prelu_w = jnp.float32(0.25)                    # PReLU weight filled 0.25
    return w, b, prelu_w


if __name__ == "__main__":
    key = jax.random.PRNGKey(0)
    k_x, k_a, k_w = jax.random.split(key, 3)

    # Small, non-aligned shapes: exercises padding, the even row-tile grid,
    # the resident-Y strip path and (below) the k-tiled streamed-Y path.
    N, IN_FT, OUT_FT = 300, 32, 48
    seq = jax.random.normal(k_x, (N, IN_FT), jnp.float32)

    # random symmetric 0/1 adjacency, no self-loops (GCNConv adds them)
    a_rand = jax.random.uniform(k_a, (N, N))
    adj = (a_rand < 0.05).astype(jnp.float32)
    adj = jnp.maximum(adj, adj.T) * (1.0 - jnp.eye(N, dtype=jnp.float32))

    w, b, prelu_w = init_params(k_w, IN_FT, OUT_FT)

    # pure-JAX f32 reference (kernel keeps A exact and rounds only Y to bf16)
    a_sl = adj + jnp.eye(N)
    deg = a_sl.sum(1)
    dis = jax.lax.rsqrt(deg)
    a_hat = a_sl * dis[:, None] * dis[None, :]
    h_ref = a_hat @ (seq @ w) + b
    ref = jnp.where(h_ref > 0, h_ref, 0.25 * h_ref)

    # default path: full-strip reduction (tk = N_pad), Y resident in VMEM
    out = jax.jit(gcn_forward)(seq, adj, w, b, prelu_w)
    jax.block_until_ready(out)
    assert out.shape == ref.shape, "shape mismatch vs reference"
    assert jnp.allclose(out, ref, atol=2e-2, rtol=2e-2), "mismatch vs reference"

    # also exercise the k-tiled / streamed-Y path used for very large graphs
    gcn_big_path = jax.jit(functools.partial(
        gcn_forward, tm=128, tk=128, y_resident=False))
    out2 = gcn_big_path(seq, adj, w, b, prelu_w)
    jax.block_until_ready(out2)
    assert jnp.allclose(out2, ref, atol=2e-2, rtol=2e-2), "streamed-path mismatch"

    print("KERNEL_OK")
</pallas_src>

<mosaic_0001>
module attributes {stable_mosaic.version = 11 : i64} {
  func.func @_xw_kernel(%arg0: i32, %arg1: memref<256x32xf32, #tpu.memory_space<vmem>>, %arg2: memref<32x128xf32, #tpu.memory_space<vmem>>, %arg3: memref<256x1xf32, #tpu.memory_space<vmem>>, %arg4: memref<256x128xbf16, #tpu.memory_space<vmem>>) attributes {dimension_semantics = [#tpu.dimension_semantics<parallel>], iteration_bounds = array<i64: 2>, scalar_prefetch = 0 : i64, scratch_operands = 0 : i64, tpu.core_type = #tpu.core_type<tc>, window_params = [{transform_indices = @transform_0, window_bounds = array<i64: 256, 32>}, {pipeline_mode = #tpu.pipeline_mode<synchronous>, transform_indices = @transform_1, window_bounds = array<i64: 32, 128>}, {transform_indices = @transform_2, window_bounds = array<i64: 256, 1>}, {transform_indices = @transform_3, window_bounds = array<i64: 256, 128>}]} {
    %c0 = arith.constant 0 : index
    %c0_0 = arith.constant 0 : index
    %0 = vector.load %arg1[%c0, %c0_0] : memref<256x32xf32, #tpu.memory_space<vmem>>, vector<256x32xf32>
    %c0_1 = arith.constant 0 : index
    %c0_2 = arith.constant 0 : index
    %1 = vector.load %arg2[%c0_1, %c0_2] : memref<32x128xf32, #tpu.memory_space<vmem>>, vector<32x128xf32>
    %cst = arith.constant dense<0.000000e+00> : vector<256x128xf32>
    %2 = tpu.matmul %0, %1, %cst {dimension_numbers = #tpu.dot_dimension_numbers<[1], [0], [0], [1], [0, 0, 1, 1], [], []>} : vector<256x32xf32>, vector<32x128xf32>, vector<256x128xf32> -> vector<256x128xf32>
    %c0_3 = arith.constant 0 : index
    %c0_4 = arith.constant 0 : index
    %3 = vector.load %arg3[%c0_3, %c0_4] : memref<256x1xf32, #tpu.memory_space<vmem>>, vector<256x1xf32>
    %4 = vector.broadcast %3 : vector<256x1xf32> to vector<256x128xf32>
    %5 = arith.mulf %4, %2 : vector<256x128xf32>
    %6 = arith.truncf %5 : vector<256x128xf32> to vector<256x128xbf16>
    %c0_5 = arith.constant 0 : index
    %c0_6 = arith.constant 0 : index
    %7 = vector.load %arg4[%c0_5, %c0_6] : memref<256x128xbf16, #tpu.memory_space<vmem>>, vector<256x128xbf16>
    tpu.vector_store %arg4[%c0_5, %c0_6], %6 {strides = array<i32>} : memref<256x128xbf16, #tpu.memory_space<vmem>>, vector<256x128xbf16>,
    return
  }
  func.func @transform_0(%arg0: i32) -> (i32, i32) {
    %c0_i32 = arith.constant 0 : i32
    %c0_i32_0 = arith.constant 0 : i32
    return %arg0, %c0_i32 : i32, i32
  }
  func.func @transform_1(%arg0: i32) -> (i32, i32) {
    %c0_i32 = arith.constant 0 : i32
    %c0_i32_0 = arith.constant 0 : i32
    %c0_i32_1 = arith.constant 0 : i32
    return %c0_i32, %c0_i32_0 : i32, i32
  }
  func.func @transform_2(%arg0: i32) -> (i32, i32) {
    %c0_i32 = arith.constant 0 : i32
    %c0_i32_0 = arith.constant 0 : i32
    return %arg0, %c0_i32 : i32, i32
  }
  func.func @transform_3(%arg0: i32) -> (i32, i32) {
    %c0_i32 = arith.constant 0 : i32
    %c0_i32_0 = arith.constant 0 : i32
    return %arg0, %c0_i32 : i32, i32
  }
}

module attributes {stable_mosaic.version = 11 : i64} {
  func.func @_gcn_kernel_resident_y(%arg0: i32, %arg1: i32, %arg2: memref<256x512xi8, #tpu.memory_space<vmem>>, %arg3: memref<512x128xbf16, #tpu.memory_space<vmem>>, %arg4: memref<256x1xf32, #tpu.memory_space<vmem>>, %arg5: memref<1x128xf32, #tpu.memory_space<vmem>>, %arg6: memref<1xf32, #tpu.memory_space<smem>>, %arg7: memref<256x128xf32, #tpu.memory_space<vmem>>) attributes {dimension_semantics = [#tpu.dimension_semantics<parallel>, #tpu.dimension_semantics<arbitrary>], iteration_bounds = array<i64: 2, 1>, scalar_prefetch = 0 : i64, scratch_operands = 0 : i64, tpu.core_type = #tpu.core_type<tc>, window_params = [{transform_indices = @transform_0, window_bounds = array<i64: 256, 512>}, {pipeline_mode = #tpu.pipeline_mode<synchronous>, transform_indices = @transform_1, window_bounds = array<i64: 512, 128>}, {transform_indices = @transform_2, window_bounds = array<i64: 256, 1>}, {pipeline_mode = #tpu.pipeline_mode<synchronous>, transform_indices = @transform_3, window_bounds = array<i64: 1, 128>}, {transform_indices = @transform_4, window_bounds = array<i64: 1>}, {transform_indices = @transform_5, window_bounds = array<i64: 256, 128>}]} {
    %c0_i32 = arith.constant 0 : i32
    %0 = arith.cmpi eq, %arg1, %c0_i32 : i32
    %1 = arith.extui %0 : i1 to i32
    %c0_i32_0 = arith.constant 0 : i32
    %2 = arith.cmpi ne, %1, %c0_i32_0 : i32
    scf.if %2 {
      %cst_9 = arith.constant 0.000000e+00 : f32
      %16 = vector.broadcast %cst_9 : f32 to vector<256x128xf32>
      %c0_10 = arith.constant 0 : index
      %c0_11 = arith.constant 0 : index
      %17 = vector.load %arg7[%c0_10, %c0_11] : memref<256x128xf32, #tpu.memory_space<vmem>>, vector<256x128xf32>
      tpu.vector_store %arg7[%c0_10, %c0_11], %16 {strides = array<i32>} : memref<256x128xf32, #tpu.memory_space<vmem>>, vector<256x128xf32>,
    } else {
    }
    %c0 = arith.constant 0 : index
    %c0_1 = arith.constant 0 : index
    %3 = vector.load %arg2[%c0, %c0_1] : memref<256x512xi8, #tpu.memory_space<vmem>>, vector<256x512xi8>
    %4 = arith.sitofp %3 : vector<256x512xi8> to vector<256x512xbf16>
    %c512_i32 = arith.constant 512 : i32
    %5 = arith.muli %arg1, %c512_i32 : i32
    %6 = tpu.assume_multiple %5, 512 : i32
    %7 = arith.index_cast %6 : i32 to index
    %c0_2 = arith.constant 0 : index
    %8 = vector.load %arg3[%7, %c0_2] : memref<512x128xbf16, #tpu.memory_space<vmem>>, vector<512x128xbf16>
    %c0_3 = arith.constant 0 : index
    %c0_4 = arith.constant 0 : index
    %9 = vector.load %arg7[%c0_3, %c0_4] : memref<256x128xf32, #tpu.memory_space<vmem>>, vector<256x128xf32>
    %cst = arith.constant dense<0.000000e+00> : vector<256x128xf32>
    %10 = tpu.matmul %4, %8, %cst {dimension_numbers = #tpu.dot_dimension_numbers<[1], [0], [0], [1], [0, 0, 1, 1], [], []>} : vector<256x512xbf16>, vector<512x128xbf16>, vector<256x128xf32> -> vector<256x128xf32>
    %11 = arith.addf %9, %10 : vector<256x128xf32>
    %c0_5 = arith.constant 0 : index
    %c0_6 = arith.constant 0 : index
    %12 = vector.load %arg7[%c0_5, %c0_6] : memref<256x128xf32, #tpu.memory_space<vmem>>, vector<256x128xf32>
    tpu.vector_store %arg7[%c0_5, %c0_6], %11 {strides = array<i32>} : memref<256x128xf32, #tpu.memory_space<vmem>>, vector<256x128xf32>,
    %c0_i32_7 = arith.constant 0 : i32
    %13 = arith.cmpi eq, %arg1, %c0_i32_7 : i32
    %14 = arith.extui %13 : i1 to i32
    %c0_i32_8 = arith.constant 0 : i32
    %15 = arith.cmpi ne, %14, %c0_i32_8 : i32
    scf.if %15 {
      %c256_i32 = arith.constant 256 : i32
      %16 = arith.muli %arg0, %c256_i32 : i32
      %17 = tpu.assume_multiple %16, 256 : i32
      %18 = arith.index_cast %17 : i32 to index
      %c0_9 = arith.constant 0 : index
      %19 = vector.load %arg3[%18, %c0_9] : memref<512x128xbf16, #tpu.memory_space<vmem>>, vector<256x128xbf16>
      %20 = arith.extf %19 : vector<256x128xbf16> to vector<256x128xf32>
      %c0_10 = arith.constant 0 : index
      %c0_11 = arith.constant 0 : index
      %21 = vector.load %arg4[%c0_10, %c0_11] : memref<256x1xf32, #tpu.memory_space<vmem>>, vector<256x1xf32>
      %c0_12 = arith.constant 0 : index
      %c0_13 = arith.constant 0 : index
      %22 = vector.load %arg7[%c0_12, %c0_13] : memref<256x128xf32, #tpu.memory_space<vmem>>, vector<256x128xf32>
      %23 = arith.addf %22, %20 : vector<256x128xf32>
      %24 = vector.broadcast %21 : vector<256x1xf32> to vector<256x128xf32>
      %25 = arith.mulf %24, %23 : vector<256x128xf32>
      %c0_14 = arith.constant 0 : index
      %c0_15 = arith.constant 0 : index
      %26 = vector.load %arg5[%c0_14, %c0_15] : memref<1x128xf32, #tpu.memory_space<vmem>>, vector<1x128xf32>
      %27 = vector.broadcast %26 : vector<1x128xf32> to vector<256x128xf32>
      %28 = arith.addf %25, %27 : vector<256x128xf32>
      %c0_16 = arith.constant 0 : index
      %29 = memref.load %arg6[%c0_16] : memref<1xf32, #tpu.memory_space<smem>>
      %cst_17 = arith.constant 0.000000e+00 : f32
      %30 = vector.broadcast %cst_17 : f32 to vector<256x128xf32>
      %31 = arith.cmpf ogt, %28, %30 : vector<256x128xf32>
      %32 = vector.broadcast %29 : f32 to vector<256x128xf32>
      %33 = arith.mulf %32, %28 : vector<256x128xf32>
      %34 = arith.select %31, %28, %33 : vector<256x128xi1>, vector<256x128xf32>
      %c0_18 = arith.constant 0 : index
      %c0_19 = arith.constant 0 : index
      %35 = vector.load %arg7[%c0_18, %c0_19] : memref<256x128xf32, #tpu.memory_space<vmem>>, vector<256x128xf32>
      tpu.vector_store %arg7[%c0_18, %c0_19], %34 {strides = array<i32>} : memref<256x128xf32, #tpu.memory_space<vmem>>, vector<256x128xf32>,
    } else {
    }
    return
  }
  func.func @transform_0(%arg0: i32, %arg1: i32) -> (i32, i32) {
    %c0_i32 = arith.constant 0 : i32
    return %arg0, %arg1 : i32, i32
  }
  func.func @transform_1(%arg0: i32, %arg1: i32) -> (i32, i32) {
    %c0_i32 = arith.constant 0 : i32
    %c0_i32_0 = arith.constant 0 : i32
    %c0_i32_1 = arith.constant 0 : i32
    return %c0_i32, %c0_i32_0 : i32, i32
  }
  func.func @transform_2(%arg0: i32, %arg1: i32) -> (i32, i32) {
    %c0_i32 = arith.constant 0 : i32
    %c0_i32_0 = arith.constant 0 : i32
    return %arg0, %c0_i32 : i32, i32
  }
  func.func @transform_3(%arg0: i32, %arg1: i32) -> (i32, i32) {
    %c0_i32 = arith.constant 0 : i32
    %c0_i32_0 = arith.constant 0 : i32
    %c0_i32_1 = arith.constant 0 : i32
    return %c0_i32, %c0_i32_0 : i32, i32
  }
  func.func @transform_4(%arg0: i32, %arg1: i32) -> i32 {
    %c0_i32 = arith.constant 0 : i32
    %c0_i32_0 = arith.constant 0 : i32
    return %c0_i32 : i32
  }
  func.func @transform_5(%arg0: i32, %arg1: i32) -> (i32, i32) {
    %c0_i32 = arith.constant 0 : i32
    %c0_i32_0 = arith.constant 0 : i32
    return %arg0, %c0_i32 : i32, i32
  }
}

</mosaic_0001>

<llo_original>
// kernel: gcn_forward.2
$region0: #{gcn_forward.2}
  #allocation0 [shape = 'u32[]', space=smem, size = 0x4, offset = 0x4, fixed_abs, tag = 'smem constant byte address 0x4 - core index']
  #allocation1 [shape = 'u32[144,128]{1,0:T(1,128)}', space=vmem, size = 0x12000, scoped, tag = 'internal scratch']
  %s0 = inlined_call_operand.vmem [shape: f32[512,32], index: 0, kind: input, shape index: {}]
  %s1 = inlined_call_operand.vmem [shape: f32[32,128], index: 1, kind: input, shape index: {}]
  %s2 = inlined_call_operand.vmem [shape: f32[512,1], index: 2, kind: input, shape index: {}]
  %s3 = inlined_call_operand.vmem [shape: bf16[512,128], index: 3, kind: output, shape index: {}]
  %s4 = sld [smem:[#allocation0]]
  $region45: #{gcn_forward.2} parent=0
    _
  %s6 = ssub.s32 1, %s4
  %s7 = scalar_select 0, %s6, %s4
  loop: start=0, step=1, limit=4
  $region2: #{gcn_forward.2} parent=0 // loop_pre_header
    _
  $region3: #{gcn_forward.2} parent=0 // loop_header
    %s9 = sphi 0, %s13
    %p10 = scmp.ge.s32.totalorder %s9, 4
    %s19 = sphi 0, %s21
    %s22 = sphi 0, %s19
    %s23 = sphi 0, %s22
    %s39 = sphi 0, %s23
    %s43 = sphi 0, %s43
    %s45 = sphi 0, %s43
    %s46 = sphi 0, %s45
    %s60 = sphi 0, %s46
    %s66 = sphi 0, %s68
    %s69 = sphi 0, %s66
    %s70 = sphi 0, %s69
    %s86 = sphi 0, %s70
    %s92 = sphi 0, %s94
    %s95 = sphi 0, %s92
    %s96 = sphi 0, %s95
    %s112 = sphi 0, %s96
  $region4: #{gcn_forward.2} parent=0 // loop_header_branch
    %12 = sbr.rel (%p10) target = $region8
  $region5: #{gcn_forward.2} parent=0 // loop_body
    %s14 = ssub.s32 %s9, 1
    %s15 = ssub.s32 %s9, 2
    %s16 = sadd.s32 %s9, 1
    %s17 = ssub.s32 %s9, %s16
    %p18 = scmp.eq.s32.totalorder %s17, 0
    %s20 = sadd.s32 %s19, 1
    %s21 = scalar_select %p18, %s19, %s20
    %p24 = pneg %p18
    %p25 = scmp.eq.s32.totalorder %s9, 1
    %p26 = por %p24, %p25
    %p27 = scmp.ne.s32.totalorder %s19, %s22
    %p28 = scmp.eq.s32.totalorder %s9, 0
    %p29 = por %p27, %p28
    %p30 = scmp.ne.s32.totalorder %s19, %s22
    %p31 = scmp.eq.s32.totalorder %s14, 1
    %p32 = por %p30, %p31
    %p33 = scmp.ne.s32.totalorder %s22, %s23
    %p34 = scmp.eq.s32.totalorder %s14, 0
    %p35 = por %p33, %p34
    %p36 = scmp.ne.s32.totalorder %s22, %s23
    %p37 = scmp.eq.s32.totalorder %s15, 1
    %p38 = por %p36, %p37
    %p40 = scmp.ne.s32.totalorder %s23, %s39
    %p41 = scmp.eq.s32.totalorder %s15, 0
    %p42 = por %p40, %p41
    %s44 = sadd.s32 %s43, 1
    %p47 = scmp.eq.s32.totalorder %s9, 1
    %p48 = scmp.ne.s32.totalorder %s43, %s45
    %p49 = scmp.eq.s32.totalorder %s9, 0
    %p50 = por %p48, %p49
    %p51 = scmp.ne.s32.totalorder %s43, %s45
    %p52 = scmp.eq.s32.totalorder %s14, 1
    %p53 = por %p51, %p52
    %p54 = scmp.ne.s32.totalorder %s45, %s46
    %p55 = scmp.eq.s32.totalorder %s14, 0
    %p56 = por %p54, %p55
    %p57 = scmp.ne.s32.totalorder %s45, %s46
    %p58 = scmp.eq.s32.totalorder %s15, 1
    %p59 = por %p57, %p58
    %p61 = scmp.ne.s32.totalorder %s46, %s60
    %p62 = scmp.eq.s32.totalorder %s15, 0
    %p63 = por %p61, %p62
    %s64 = ssub.s32 %s9, %s16
    %p65 = scmp.eq.s32.totalorder %s64, 0
    %s67 = sadd.s32 %s66, 1
    %s68 = scalar_select %p65, %s66, %s67
    %p71 = pneg %p65
    %p72 = scmp.eq.s32.totalorder %s9, 1
    %p73 = por %p71, %p72
    %p74 = scmp.ne.s32.totalorder %s66, %s69
    %p75 = scmp.eq.s32.totalorder %s9, 0
    %p76 = por %p74, %p75
    %p77 = scmp.ne.s32.totalorder %s66, %s69
    %p78 = scmp.eq.s32.totalorder %s14, 1
    %p79 = por %p77, %p78
    %p80 = scmp.ne.s32.totalorder %s69, %s70
    %p81 = scmp.eq.s32.totalorder %s14, 0
    %p82 = por %p80, %p81
    %p83 = scmp.ne.s32.totalorder %s69, %s70
    %p84 = scmp.eq.s32.totalorder %s15, 1
    %p85 = por %p83, %p84
    %p87 = scmp.ne.s32.totalorder %s70, %s86
    %p88 = scmp.eq.s32.totalorder %s15, 0
    %p89 = por %p87, %p88
    %s90 = ssub.s32 %s9, %s16
    %p91 = scmp.eq.s32.totalorder %s90, 0
    %s93 = sadd.s32 %s92, 1
    %s94 = scalar_select %p91, %s92, %s93
    %p97 = pneg %p91
    %p98 = scmp.eq.s32.totalorder %s9, 1
    %p99 = por %p97, %p98
    %p100 = scmp.ne.s32.totalorder %s92, %s95
    %p101 = scmp.eq.s32.totalorder %s9, 0
    %p102 = por %p100, %p101
    %p103 = scmp.ne.s32.totalorder %s92, %s95
    %p104 = scmp.eq.s32.totalorder %s14, 1
    %p105 = por %p103, %p104
    %p106 = scmp.ne.s32.totalorder %s95, %s96
    %p107 = scmp.eq.s32.totalorder %s14, 0
    %p108 = por %p106, %p107
    %p109 = scmp.ne.s32.totalorder %s95, %s96
    %p110 = scmp.eq.s32.totalorder %s15, 1
    %p111 = por %p109, %p110
    %p113 = scmp.ne.s32.totalorder %s96, %s112
    %p114 = scmp.eq.s32.totalorder %s15, 0
    %p115 = por %p113, %p114
    %p116 = scmp.le.s32.totalorder 1, %s9
    %p117 = scmp.lt.s32.totalorder %s9, 3
    %p118 = pnand %p116, %p117
    %p119 = pneg %p118
    // Predicated region
    $region9: #{gcn_forward.2} parent=5 // pred_check
      _
    $region10: #{gcn_forward.2} parent=5 // pred_check_branch
      %121 = sbr.rel (%p118) target = $region12
    $region11: #{gcn_forward.2} parent=5 // pred_region
      %s122 = ssub.s32 %s9, 1
      // Predicated region
      $region13: #{gcn_forward.2} parent=11 // pred_check
        %p123 = pneg %p56
      $region14: #{gcn_forward.2} parent=11 // pred_check_branch
        %125 = sbr.rel (%p123) target = $region16
      $region15: #{gcn_forward.2} parent=11 // pred_region
        _
      $region16: #{gcn_forward.2} parent=11 // pred_fallthru
        _
    $region12: #{gcn_forward.2} parent=5 // pred_fallthru
      _
    %p126 = scmp.lt.s32.totalorder %s9, 2
    // Predicated region
    $region17: #{gcn_forward.2} parent=5 // pred_check
      %p127 = pneg %p126
    $region18: #{gcn_forward.2} parent=5 // pred_check_branch
      %129 = sbr.rel (%p127) target = $region20
    $region19: #{gcn_forward.2} parent=5 // pred_region
      // Predicated region
      $region21: #{gcn_forward.2} parent=19 // pred_check
        %p130 = pneg %p29
      $region22: #{gcn_forward.2} parent=19 // pred_check_branch
        %132 = sbr.rel (%p130) target = $region24
      $region23: #{gcn_forward.2} parent=19 // pred_region
        %s133 = smul.u32 32, %s9
        %p134 = scmp.lt.s32.totalorder %s133, 63
        %s135 = scalar_select %p134, %s133, 63
        %s136 = smul.addr %s135, 8
        %s137 = scalar_lea.vmem %s0, %s136
        %s138 = smul.u32 32, %s9
      $region24: #{gcn_forward.2} parent=19 // pred_fallthru
        _
      // Predicated region
      $region25: #{gcn_forward.2} parent=19 // pred_check
        %p139 = pneg %p76
      $region26: #{gcn_forward.2} parent=19 // pred_check_branch
        %141 = sbr.rel (%p139) target = $region28
      $region27: #{gcn_forward.2} parent=19 // pred_region
        %s142 = smul.u32 32, %s9
        %p143 = scmp.lt.s32.totalorder %s142, 63
        %s144 = scalar_select %p143, %s142, 63
        %s145 = smul.addr %s144, 8
        %s146 = scalar_lea.vmem %s2, %s145
        %s147 = smul.u32 32, %s9
      $region28: #{gcn_forward.2} parent=19 // pred_fallthru
        _
    $region20: #{gcn_forward.2} parent=5 // pred_fallthru
      _
    %p148 = scmp.le.s32.totalorder 1, %s9
    %p149 = scmp.lt.s32.totalorder %s9, 3
    %p150 = pnand %p148, %p149
    %p151 = pneg %p150
    // Predicated region
    $region29: #{gcn_forward.2} parent=5 // pred_check
      _
    $region30: #{gcn_forward.2} parent=5 // pred_check_branch
      %153 = sbr.rel (%p150) target = $region32
    $region31: #{gcn_forward.2} parent=5 // pred_region
      %s154 = ssub.s32 %s9, 1
      %s155 = smul.u32 32, %s14
      %p156 = scmp.lt.s32.totalorder %s155, 63
      %s157 = scalar_select %p156, %s155, 63
      %s158 = smul.addr %s157, 8
      %s159 = scalar_lea.vmem %s0, %s158
      %p160 = pneg %p35
      %p161 = pneg %p32
      %p162 = pneg %p56
      %p163 = pneg %p53
      %s164 = smul.u32 32, %s14
      %p165 = scmp.lt.s32.totalorder %s164, 63
      %s166 = scalar_select %p165, %s164, 63
      %s167 = smul.addr %s166, 8
      %s168 = scalar_lea.vmem %s2, %s167
      %p169 = pneg %p82
      %p170 = pneg %p79
      %p171 = pneg %p108
      %p172 = pneg %p105
      %s173 = smul.u32 32, %s14
      %p174 = scmp.lt.s32.totalorder %s173, 63
      %s175 = scalar_select %p174, %s173, 63
      %s176 = smul.addr %s175, 4
      %s177 = scalar_lea.vmem %s3, %s176
      %s178 = smul.u32 32, %s14
      %p179 = scmp.lt.s32.totalorder %s178, 63
      %s180 = scalar_select %p179, %s178, 63
      %s181 = smul.addr %s180, 8
      %s182 = scalar_lea.vmem %s0, %s181
      %s183 = smul.u32 32, %s14
      %s184 = smul.u32 32, %s14
      %p185 = scmp.lt.s32.totalorder %s184, 63
      %s186 = scalar_select %p185, %s184, 63
      %s187 = smul.addr %s186, 8
      %s188 = scalar_lea.vmem %s2, %s187
      %s189 = smul.u32 32, %s14
      %s190 = smul.u32 32, %s14
      %p191 = scmp.lt.s32.totalorder %s190, 63
      %s192 = scalar_select %p191, %s190, 63
      %s193 = smul.addr %s192, 4
      %s194 = scalar_lea.vmem %s3, %s193
      %s195 = smul.u32 32, %s14
      %v196 = vld [vmem:[%s182] sm:$0xff]
      %v197 = vld [vmem:[%s182 + $0x8] sm:$0xff]
      %v198 = vld [vmem:[%s182 + $0x10] sm:$0xff]
      %v199 = vld [vmem:[%s182 + $0x18] sm:$0xff]
      %v200 = vld [vmem:[%s182 + $0x20] sm:$0xff]
      %v201 = vld [vmem:[%s182 + $0x28] sm:$0xff]
      %v202 = vld [vmem:[%s182 + $0x30] sm:$0xff]
      %v203 = vld [vmem:[%s182 + $0x38] sm:$0xff]
      %v204 = vld [vmem:[%s182 + $0x40] sm:$0xff]
      %v205 = vld [vmem:[%s182 + $0x48] sm:$0xff]
      %v206 = vld [vmem:[%s182 + $0x50] sm:$0xff]
      %v207 = vld [vmem:[%s182 + $0x58] sm:$0xff]
      %v208 = vld [vmem:[%s182 + $0x60] sm:$0xff]
      %v209 = vld [vmem:[%s182 + $0x68] sm:$0xff]
      %v210 = vld [vmem:[%s182 + $0x70] sm:$0xff]
      %v211 = vld [vmem:[%s182 + $0x78] sm:$0xff]
      %v212 = vld [vmem:[%s182 + $0x80] sm:$0xff]
      %v213 = vld [vmem:[%s182 + $0x88] sm:$0xff]
      %v214 = vld [vmem:[%s182 + $0x90] sm:$0xff]
      %v215 = vld [vmem:[%s182 + $0x98] sm:$0xff]
      %v216 = vld [vmem:[%s182 + $0xa0] sm:$0xff]
      %v217 = vld [vmem:[%s182 + $0xa8] sm:$0xff]
      %v218 = vld [vmem:[%s182 + $0xb0] sm:$0xff]
      %v219 = vld [vmem:[%s182 + $0xb8] sm:$0xff]
      %v220 = vld [vmem:[%s182 + $0xc0] sm:$0xff]
      %v221 = vld [vmem:[%s182 + $0xc8] sm:$0xff]
      %v222 = vld [vmem:[%s182 + $0xd0] sm:$0xff]
      %v223 = vld [vmem:[%s182 + $0xd8] sm:$0xff]
      %v224 = vld [vmem:[%s182 + $0xe0] sm:$0xff]
      %v225 = vld [vmem:[%s182 + $0xe8] sm:$0xff]
      %v226 = vld [vmem:[%s182 + $0xf0] sm:$0xff]
      %v227 = vld [vmem:[%s182 + $0xf8] sm:$0xff]
      %v228 = vld [vmem:[%s1] sm:$0xff]
      %v229 = vld [vmem:[%s1 + $0x8] sm:$0xff]
      %v230 = vld [vmem:[%s1 + $0x10] sm:$0xff]
      %v231 = vld [vmem:[%s1 + $0x18] sm:$0xff]
      %vm232 = vcmask 261120
      %v234 = vsel %vm232, %v196, 0
      %v237 = vsel %vm232, %v197, 0
      %v240 = vsel %vm232, %v198, 0
      %v243 = vsel %vm232, %v199, 0
      %v246 = vsel %vm232, %v200, 0
      %v249 = vsel %vm232, %v201, 0
      %v252 = vsel %vm232, %v202, 0
      %v255 = vsel %vm232, %v203, 0
      %v258 = vsel %vm232, %v204, 0
      %v261 = vsel %vm232, %v205, 0
      %v264 = vsel %vm232, %v206, 0
      %v267 = vsel %vm232, %v207, 0
      %v270 = vsel %vm232, %v208, 0
      %v273 = vsel %vm232, %v209, 0
      %v276 = vsel %vm232, %v210, 0
      %v279 = vsel %vm232, %v211, 0
      %v282 = vsel %vm232, %v212, 0
      %v285 = vsel %vm232, %v213, 0
      %v288 = vsel %vm232, %v214, 0
      %v291 = vsel %vm232, %v215, 0
      %v294 = vsel %vm232, %v216, 0
      %v297 = vsel %vm232, %v217, 0
      %v300 = vsel %vm232, %v218, 0
      %v303 = vsel %vm232, %v219, 0
      %v306 = vsel %vm232, %v220, 0
      %v309 = vsel %vm232, %v221, 0
      %v312 = vsel %vm232, %v222, 0
      %v315 = vsel %vm232, %v223, 0
      %v318 = vsel %vm232, %v224, 0
      %v321 = vsel %vm232, %v225, 0
      %v324 = vsel %vm232, %v226, 0
      %v327 = vsel %vm232, %v227, 0
      %329 = vmatprep.subr.mxu0 0.0
      %330 = vmatpush1.msra.mxu0 0.0
      %331 = vmatprep.subr.mxu0 0.0
      %332 = vmatpush1.msra.mxu0 0.0
      %333 = vmatprep.subr.mxu0 0.0
      %334 = vmatpush1.msra.mxu0 0.0
      %335 = vmatprep.subr.mxu0 0.0
      %336 = vmatpush1.msra.mxu0 0.0
      %337 = vmatprep.subr.mxu0 0.0
      %338 = vmatpush1.msra.mxu0 0.0
      %339 = vmatprep.subr.mxu0 0.0
      %340 = vmatpush1.msra.mxu0 0.0
      %341 = vmatprep.subr.mxu0 0.0
      %342 = vmatpush1.msra.mxu0 0.0
      %343 = vmatprep.subr.mxu0 0.0
      %344 = vmatpush1.msra.mxu0 0.0
      %345 = vmatprep.subr.mxu0 0.0
      %346 = vmatpush1.msra.mxu0 0.0
      %347 = vmatprep.subr.mxu0 0.0
      %348 = vmatpush1.msra.mxu0 0.0
      %349 = vmatprep.subr.mxu0 0.0
      %350 = vmatpush1.msra.mxu0 0.0
      %351 = vmatprep.subr.mxu0 0.0
      %352 = vmatpush1.msra.mxu0 0.0
      %353 = vmatprep.subr.mxu0 0.0
      %354 = vmatpush1.msra.mxu0 %v231
      %355 = vmatprep.subr.mxu0 0.0
      %356 = vmatpush1.msra.mxu0 %v230
      %357 = vmatprep.subr.mxu0 0.0
      %358 = vmatpush1.msra.mxu0 %v229
      %359 = vmatprep.subr.mxu0 0.0
      %360 = vmatpush1.msra.mxu0 %v228
      %361 = vmatprep.subr.mxu0 0.0
      %362 = vmatpush2.msra.mxu0 0.0
      %363 = vmatprep.subr.mxu0 0.0
      %364 = vmatpush2.msra.mxu0 0.0
      %365 = vmatprep.subr.mxu0 0.0
      %366 = vmatpush2.msra.mxu0 0.0
      %367 = vmatprep.subr.mxu0 0.0
      %368 = vmatpush2.msra.mxu0 0.0
      %369 = vmatprep.subr.mxu0 0.0
      %370 = vmatpush2.msra.mxu0 0.0
      %371 = vmatprep.subr.mxu0 0.0
      %372 = vmatpush2.msra.mxu0 0.0
      %373 = vmatprep.subr.mxu0 0.0
      %374 = vmatpush2.msra.mxu0 0.0
      %375 = vmatprep.subr.mxu0 0.0
      %376 = vmatpush2.msra.mxu0 0.0
      %377 = vmatprep.subr.mxu0 0.0
      %378 = vmatpush2.msra.mxu0 0.0
      %379 = vmatprep.subr.mxu0 0.0
      %380 = vmatpush2.msra.mxu0 0.0
      %381 = vmatprep.subr.mxu0 0.0
      %382 = vmatpush2.msra.mxu0 0.0
      %383 = vmatprep.subr.mxu0 0.0
      %384 = vmatpush2.msra.mxu0 0.0
      %385 = vmatprep.subr.mxu0 0.0
      %386 = vmatpush2.msra.mxu0 0.0
      %387 = vmatprep.subr.mxu0 0.0
      %388 = vmatpush2.msra.mxu0 0.0
      %389 = vmatprep.subr.mxu0 0.0
      %390 = vmatpush2.msra.mxu0 0.0
      %391 = vmatprep.subr.mxu0 0.0
      %392 = vmatpush2.msra.mxu0 0.0
      %393 = vmatprep.mubr.f32.mxu0 0.0
      %394 = vmatmul.mubr.f32.gmra.mxu0 %v234
      %v395 = vpop.f32.mrf.mxu0
      %v396 = vadd.f32 0.0, %v395
      %v397 = vpop.f32.mrf.mxu0
      %398 = vmatprep.mubr.f32.mxu0 0.0
      %399 = vmatmul.mubr.f32.gmra.mxu0 %v237
      %v400 = vpop.f32.mrf.mxu0
      %v401 = vadd.f32 0.0, %v400
      %v402 = vpop.f32.mrf.mxu0
      %403 = vmatprep.mubr.f32.mxu0 0.0
      %404 = vmatmul.mubr.f32.gmra.mxu0 %v240
      %v405 = vpop.f32.mrf.mxu0
      %v406 = vadd.f32 0.0, %v405
      %v407 = vpop.f32.mrf.mxu0
      %408 = vmatprep.mubr.f32.mxu0 0.0
      %409 = vmatmul.mubr.f32.gmra.mxu0 %v243
      %v410 = vpop.f32.mrf.mxu0
      %v411 = vadd.f32 0.0, %v410
      %v412 = vpop.f32.mrf.mxu0
      %413 = vmatprep.mubr.f32.mxu0 0.0
      %414 = vmatmul.mubr.f32.gmra.mxu0 %v246
      %v415 = vpop.f32.mrf.mxu0
      %v416 = vadd.f32 0.0, %v415
      %v417 = vpop.f32.mrf.mxu0
      %418 = vmatprep.mubr.f32.mxu0 0.0
      %419 = vmatmul.mubr.f32.gmra.mxu0 %v249
      %v420 = vpop.f32.mrf.mxu0
      %v421 = vadd.f32 0.0, %v420
      %v422 = vpop.f32.mrf.mxu0
      %423 = vmatprep.mubr.f32.mxu0 0.0
      %424 = vmatmul.mubr.f32.gmra.mxu0 %v252
      %v425 = vpop.f32.mrf.mxu0
      %v426 = vadd.f32 0.0, %v425
      %v427 = vpop.f32.mrf.mxu0
      %428 = vmatprep.mubr.f32.mxu0 0.0
      %429 = vmatmul.mubr.f32.gmra.mxu0 %v255
      %v430 = vpop.f32.mrf.mxu0
      %v431 = vadd.f32 0.0, %v430
      %v432 = vpop.f32.mrf.mxu0
      %433 = vmatprep.mubr.f32.mxu0 0.0
      %434 = vmatmul.mubr.f32.gmra.mxu0 %v258
      %v435 = vpop.f32.mrf.mxu0
      %v436 = vadd.f32 0.0, %v435
      %v437 = vpop.f32.mrf.mxu0
      %438 = vmatprep.mubr.f32.mxu0 0.0
      %439 = vmatmul.mubr.f32.gmra.mxu0 %v261
      %v440 = vpop.f32.mrf.mxu0
      %v441 = vadd.f32 0.0, %v440
      %v442 = vpop.f32.mrf.mxu0
      %443 = vmatprep.mubr.f32.mxu0 0.0
      %444 = vmatmul.mubr.f32.gmra.mxu0 %v264
      %v445 = vpop.f32.mrf.mxu0
      %v446 = vadd.f32 0.0, %v445
      %v447 = vpop.f32.mrf.mxu0
      %448 = vmatprep.mubr.f32.mxu0 0.0
      %449 = vmatmul.mubr.f32.gmra.mxu0 %v267
      %v450 = vpop.f32.mrf.mxu0
      %v451 = vadd.f32 0.0, %v450
      %v452 = vpop.f32.mrf.mxu0
      %453 = vmatprep.mubr.f32.mxu0 0.0
      %454 = vmatmul.mubr.f32.gmra.mxu0 %v270
      %v455 = vpop.f32.mrf.mxu0
      %v456 = vadd.f32 0.0, %v455
      %v457 = vpop.f32.mrf.mxu0
      %458 = vmatprep.mubr.f32.mxu0 0.0
      %459 = vmatmul.mubr.f32.gmra.mxu0 %v273
      %v460 = vpop.f32.mrf.mxu0
      %v461 = vadd.f32 0.0, %v460
      %v462 = vpop.f32.mrf.mxu0
      %463 = vmatprep.mubr.f32.mxu0 0.0
      %464 = vmatmul.mubr.f32.gmra.mxu0 %v276
      %v465 = vpop.f32.mrf.mxu0
      %v466 = vadd.f32 0.0, %v465
      %v467 = vpop.f32.mrf.mxu0
      %468 = vmatprep.mubr.f32.mxu0 0.0
      %469 = vmatmul.mubr.f32.gmra.mxu0 %v279
      %v470 = vpop.f32.mrf.mxu0
      %v471 = vadd.f32 0.0, %v470
      %v472 = vpop.f32.mrf.mxu0
      %473 = vmatprep.mubr.f32.mxu0 0.0
      %474 = vmatmul.mubr.f32.gmra.mxu0 %v282
      %v475 = vpop.f32.mrf.mxu0
      %v476 = vadd.f32 0.0, %v475
      %v477 = vpop.f32.mrf.mxu0
      %478 = vmatprep.mubr.f32.mxu0 0.0
      %479 = vmatmul.mubr.f32.gmra.mxu0 %v285
      %v480 = vpop.f32.mrf.mxu0
      %v481 = vadd.f32 0.0, %v480
      %v482 = vpop.f32.mrf.mxu0
      %483 = vmatprep.mubr.f32.mxu0 0.0
      %484 = vmatmul.mubr.f32.gmra.mxu0 %v288
      %v485 = vpop.f32.mrf.mxu0
      %v486 = vadd.f32 0.0, %v485
      %v487 = vpop.f32.mrf.mxu0
      %488 = vmatprep.mubr.f32.mxu0 0.0
      %489 = vmatmul.mubr.f32.gmra.mxu0 %v291
      %v490 = vpop.f32.mrf.mxu0
      %v491 = vadd.f32 0.0, %v490
      %v492 = vpop.f32.mrf.mxu0
      %493 = vmatprep.mubr.f32.mxu0 0.0
      %494 = vmatmul.mubr.f32.gmra.mxu0 %v294
      %v495 = vpop.f32.mrf.mxu0
      %v496 = vadd.f32 0.0, %v495
      %v497 = vpop.f32.mrf.mxu0
      %498 = vmatprep.mubr.f32.mxu0 0.0
      %499 = vmatmul.mubr.f32.gmra.mxu0 %v297
      %v500 = vpop.f32.mrf.mxu0
      %v501 = vadd.f32 0.0, %v500
      %v502 = vpop.f32.mrf.mxu0
      %503 = vmatprep.mubr.f32.mxu0 0.0
      %504 = vmatmul.mubr.f32.gmra.mxu0 %v300
      %v505 = vpop.f32.mrf.mxu0
      %v506 = vadd.f32 0.0, %v505
      %v507 = vpop.f32.mrf.mxu0
      %508 = vmatprep.mubr.f32.mxu0 0.0
      %509 = vmatmul.mubr.f32.gmra.mxu0 %v303
      %v510 = vpop.f32.mrf.mxu0
      %v511 = vadd.f32 0.0, %v510
      %v512 = vpop.f32.mrf.mxu0
      %513 = vmatprep.mubr.f32.mxu0 0.0
      %514 = vmatmul.mubr.f32.gmra.mxu0 %v306
      %v515 = vpop.f32.mrf.mxu0
      %v516 = vadd.f32 0.0, %v515
      %v517 = vpop.f32.mrf.mxu0
      %518 = vmatprep.mubr.f32.mxu0 0.0
      %519 = vmatmul.mubr.f32.gmra.mxu0 %v309
      %v520 = vpop.f32.mrf.mxu0
      %v521 = vadd.f32 0.0, %v520
      %v522 = vpop.f32.mrf.mxu0
      %523 = vmatprep.mubr.f32.mxu0 0.0
      %524 = vmatmul.mubr.f32.gmra.mxu0 %v312
      %v525 = vpop.f32.mrf.mxu0
      %v526 = vadd.f32 0.0, %v525
      %v527 = vpop.f32.mrf.mxu0
      %528 = vmatprep.mubr.f32.mxu0 0.0
      %529 = vmatmul.mubr.f32.gmra.mxu0 %v315
      %v530 = vpop.f32.mrf.mxu0
      %v531 = vadd.f32 0.0, %v530
      %v532 = vpop.f32.mrf.mxu0
      %533 = vmatprep.mubr.f32.mxu0 0.0
      %534 = vmatmul.mubr.f32.gmra.mxu0 %v318
      %v535 = vpop.f32.mrf.mxu0
      %v536 = vadd.f32 0.0, %v535
      %v537 = vpop.f32.mrf.mxu0
      %538 = vmatprep.mubr.f32.mxu0 0.0
      %539 = vmatmul.mubr.f32.gmra.mxu0 %v321
      %v540 = vpop.f32.mrf.mxu0
      %v541 = vadd.f32 0.0, %v540
      %v542 = vpop.f32.mrf.mxu0
      %543 = vmatprep.mubr.f32.mxu0 0.0
      %544 = vmatmul.mubr.f32.gmra.mxu0 %v324
      %v545 = vpop.f32.mrf.mxu0
      %v546 = vadd.f32 0.0, %v545
      %v547 = vpop.f32.mrf.mxu0
      %548 = vmatprep.mubr.f32.mxu0 0.0
      %549 = vmatmul.mubr.f32.gmra.mxu0 %v327
      %v550 = vpop.f32.mrf.mxu0
      %v551 = vadd.f32 0.0, %v550
      %v552 = vpop.f32.mrf.mxu0
      %553 = vdwg.mxu0
      %v554 = vld [vmem:[%s188] sm:$0xff]
      %v555 = vld [vmem:[%s188 + $0x8] sm:$0xff]
      %v556 = vld [vmem:[%s188 + $0x10] sm:$0xff]
      %v557 = vld [vmem:[%s188 + $0x18] sm:$0xff]
      %v558 = vld [vmem:[%s188 + $0x20] sm:$0xff]
      %v559 = vld [vmem:[%s188 + $0x28] sm:$0xff]
      %v560 = vld [vmem:[%s188 + $0x30] sm:$0xff]
      %v561 = vld [vmem:[%s188 + $0x38] sm:$0xff]
      %v562 = vld [vmem:[%s188 + $0x40] sm:$0xff]
      %v563 = vld [vmem:[%s188 + $0x48] sm:$0xff]
      %v564 = vld [vmem:[%s188 + $0x50] sm:$0xff]
      %v565 = vld [vmem:[%s188 + $0x58] sm:$0xff]
      %v566 = vld [vmem:[%s188 + $0x60] sm:$0xff]
      %v567 = vld [vmem:[%s188 + $0x68] sm:$0xff]
      %v568 = vld [vmem:[%s188 + $0x70] sm:$0xff]
      %v569 = vld [vmem:[%s188 + $0x78] sm:$0xff]
      %v570 = vld [vmem:[%s188 + $0x80] sm:$0xff]
      %v571 = vld [vmem:[%s188 + $0x88] sm:$0xff]
      %v572 = vld [vmem:[%s188 + $0x90] sm:$0xff]
      %v573 = vld [vmem:[%s188 + $0x98] sm:$0xff]
      %v574 = vld [vmem:[%s188 + $0xa0] sm:$0xff]
      %v575 = vld [vmem:[%s188 + $0xa8] sm:$0xff]
      %v576 = vld [vmem:[%s188 + $0xb0] sm:$0xff]
      %v577 = vld [vmem:[%s188 + $0xb8] sm:$0xff]
      %v578 = vld [vmem:[%s188 + $0xc0] sm:$0xff]
      %v579 = vld [vmem:[%s188 + $0xc8] sm:$0xff]
      %v580 = vld [vmem:[%s188 + $0xd0] sm:$0xff]
      %v581 = vld [vmem:[%s188 + $0xd8] sm:$0xff]
      %v582 = vld [vmem:[%s188 + $0xe0] sm:$0xff]
      %v583 = vld [vmem:[%s188 + $0xe8] sm:$0xff]
      %v584 = vld [vmem:[%s188 + $0xf0] sm:$0xff]
      %v585 = vld [vmem:[%s188 + $0xf8] sm:$0xff]
      %587 = vset.pattern.permute.xlu0 0
      %588 = vperm.xlu0 %587, %v554
      %v589 = vpop.permute.xlu0 %588
      %592 = vset.pattern.permute.xlu0 0
      %593 = vperm.xlu0 %592, %v555
      %v594 = vpop.permute.xlu0 %593
      %597 = vset.pattern.permute.xlu0 0
      %598 = vperm.xlu0 %597, %v556
      %v599 = vpop.permute.xlu0 %598
      %602 = vset.pattern.permute.xlu0 0
      %603 = vperm.xlu0 %602, %v557
      %v604 = vpop.permute.xlu0 %603
      %607 = vset.pattern.permute.xlu0 0
      %608 = vperm.xlu0 %607, %v558
      %v609 = vpop.permute.xlu0 %608
      %612 = vset.pattern.permute.xlu0 0
      %613 = vperm.xlu0 %612, %v559
      %v614 = vpop.permute.xlu0 %613
      %617 = vset.pattern.permute.xlu0 0
      %618 = vperm.xlu0 %617, %v560
      %v619 = vpop.permute.xlu0 %618
      %622 = vset.pattern.permute.xlu0 0
      %623 = vperm.xlu0 %622, %v561
      %v624 = vpop.permute.xlu0 %623
      %627 = vset.pattern.permute.xlu0 0
      %628 = vperm.xlu0 %627, %v562
      %v629 = vpop.permute.xlu0 %628
      %632 = vset.pattern.permute.xlu0 0
      %633 = vperm.xlu0 %632, %v563
      %v634 = vpop.permute.xlu0 %633
      %637 = vset.pattern.permute.xlu0 0
      %638 = vperm.xlu0 %637, %v564
      %v639 = vpop.permute.xlu0 %638
      %642 = vset.pattern.permute.xlu0 0
      %643 = vperm.xlu0 %642, %v565
      %v644 = vpop.permute.xlu0 %643
      %647 = vset.pattern.permute.xlu0 0
      %648 = vperm.xlu0 %647, %v566
      %v649 = vpop.permute.xlu0 %648
      %652 = vset.pattern.permute.xlu0 0
      %653 = vperm.xlu0 %652, %v567
      %v654 = vpop.permute.xlu0 %653
      %657 = vset.pattern.permute.xlu0 0
      %658 = vperm.xlu0 %657, %v568
      %v659 = vpop.permute.xlu0 %658
      %662 = vset.pattern.permute.xlu0 0
      %663 = vperm.xlu0 %662, %v569
      %v664 = vpop.permute.xlu0 %663
      %667 = vset.pattern.permute.xlu0 0
      %668 = vperm.xlu0 %667, %v570
      %v669 = vpop.permute.xlu0 %668
      %672 = vset.pattern.permute.xlu0 0
      %673 = vperm.xlu0 %672, %v571
      %v674 = vpop.permute.xlu0 %673
      %677 = vset.pattern.permute.xlu0 0
      %678 = vperm.xlu0 %677, %v572
      %v679 = vpop.permute.xlu0 %678
      %682 = vset.pattern.permute.xlu0 0
      %683 = vperm.xlu0 %682, %v573
      %v684 = vpop.permute.xlu0 %683
      %687 = vset.pattern.permute.xlu0 0
      %688 = vperm.xlu0 %687, %v574
      %v689 = vpop.permute.xlu0 %688
      %692 = vset.pattern.permute.xlu0 0
      %693 = vperm.xlu0 %692, %v575
      %v694 = vpop.permute.xlu0 %693
      %697 = vset.pattern.permute.xlu0 0
      %698 = vperm.xlu0 %697, %v576
      %v699 = vpop.permute.xlu0 %698
      %702 = vset.pattern.permute.xlu0 0
      %703 = vperm.xlu0 %702, %v577
      %v704 = vpop.permute.xlu0 %703
      %707 = vset.pattern.permute.xlu0 0
      %708 = vperm.xlu0 %707, %v578
      %v709 = vpop.permute.xlu0 %708
      %712 = vset.pattern.permute.xlu0 0
      %713 = vperm.xlu0 %712, %v579
      %v714 = vpop.permute.xlu0 %713
      %717 = vset.pattern.permute.xlu0 0
      %718 = vperm.xlu0 %717, %v580
      %v719 = vpop.permute.xlu0 %718
      %722 = vset.pattern.permute.xlu0 0
      %723 = vperm.xlu0 %722, %v581
      %v724 = vpop.permute.xlu0 %723
      %727 = vset.pattern.permute.xlu0 0
      %728 = vperm.xlu0 %727, %v582
      %v729 = vpop.permute.xlu0 %728
      %732 = vset.pattern.permute.xlu0 0
      %733 = vperm.xlu0 %732, %v583
      %v734 = vpop.permute.xlu0 %733
      %737 = vset.pattern.permute.xlu0 0
      %738 = vperm.xlu0 %737, %v584
      %v739 = vpop.permute.xlu0 %738
      %742 = vset.pattern.permute.xlu0 0
      %743 = vperm.xlu0 %742, %v585
      %v744 = vpop.permute.xlu0 %743
      %v746 = vmul.f32 %v589, %v396
      %v747 = vmul.f32 %v594, %v401
      %v748 = vmul.f32 %v599, %v406
      %v749 = vmul.f32 %v604, %v411
      %v750 = vmul.f32 %v609, %v416
      %v751 = vmul.f32 %v614, %v421
      %v752 = vmul.f32 %v619, %v426
      %v753 = vmul.f32 %v624, %v431
      %v754 = vmul.f32 %v629, %v436
      %v755 = vmul.f32 %v634, %v441
      %v756 = vmul.f32 %v639, %v446
      %v757 = vmul.f32 %v644, %v451
      %v758 = vmul.f32 %v649, %v456
      %v759 = vmul.f32 %v654, %v461
      %v760 = vmul.f32 %v659, %v466
      %v761 = vmul.f32 %v664, %v471
      %v762 = vmul.f32 %v669, %v476
      %v763 = vmul.f32 %v674, %v481
      %v764 = vmul.f32 %v679, %v486
      %v765 = vmul.f32 %v684, %v491
      %v766 = vmul.f32 %v689, %v496
      %v767 = vmul.f32 %v694, %v501
      %v768 = vmul.f32 %v699, %v506
      %v769 = vmul.f32 %v704, %v511
      %v770 = vmul.f32 %v709, %v516
      %v771 = vmul.f32 %v714, %v521
      %v772 = vmul.f32 %v719, %v526
      %v773 = vmul.f32 %v724, %v531
      %v774 = vmul.f32 %v729, %v536
      %v775 = vmul.f32 %v734, %v541
      %v776 = vmul.f32 %v739, %v546
      %v777 = vmul.f32 %v744, %v551
      %v778 = vpack.c.bf16 %v747, %v746
      %v779 = vpack.c.bf16 %v749, %v748
      %v780 = vpack.c.bf16 %v751, %v750
      %v781 = vpack.c.bf16 %v753, %v752
      %v782 = vpack.c.bf16 %v755, %v754
      %v783 = vpack.c.bf16 %v757, %v756
      %v784 = vpack.c.bf16 %v759, %v758
      %v785 = vpack.c.bf16 %v761, %v760
      %v786 = vpack.c.bf16 %v763, %v762
      %v787 = vpack.c.bf16 %v765, %v764
      %v788 = vpack.c.bf16 %v767, %v766
      %v789 = vpack.c.bf16 %v769, %v768
      %v790 = vpack.c.bf16 %v771, %v770
      %v791 = vpack.c.bf16 %v773, %v772
      %v792 = vpack.c.bf16 %v775, %v774
      %v793 = vpack.c.bf16 %v777, %v776
      %v810 = vunpack.c.l.b16 %v778
      %v811 = vunpack.c.h.b16 %v778
      %v812 = vunpack.c.l.b16 %v779
      %v813 = vunpack.c.h.b16 %v779
      %v814 = vunpack.c.l.b16 %v780
      %v815 = vunpack.c.h.b16 %v780
      %v816 = vunpack.c.l.b16 %v781
      %v817 = vunpack.c.h.b16 %v781
      %v818 = vunpack.c.l.b16 %v782
      %v819 = vunpack.c.h.b16 %v782
      %v820 = vunpack.c.l.b16 %v783
      %v821 = vunpack.c.h.b16 %v783
      %v822 = vunpack.c.l.b16 %v784
      %v823 = vunpack.c.h.b16 %v784
      %v824 = vunpack.c.l.b16 %v785
      %v825 = vunpack.c.h.b16 %v785
      %v826 = vunpack.c.l.b16 %v786
      %v827 = vunpack.c.h.b16 %v786
      %v828 = vunpack.c.l.b16 %v787
      %v829 = vunpack.c.h.b16 %v787
      %v830 = vunpack.c.l.b16 %v788
      %v831 = vunpack.c.h.b16 %v788
      %v832 = vunpack.c.l.b16 %v789
      %v833 = vunpack.c.h.b16 %v789
      %v834 = vunpack.c.l.b16 %v790
      %v835 = vunpack.c.h.b16 %v790
      %v836 = vunpack.c.l.b16 %v791
      %v837 = vunpack.c.h.b16 %v791
      %v838 = vunpack.c.l.b16 %v792
      %v839 = vunpack.c.h.b16 %v792
      %v840 = vunpack.c.l.b16 %v793
      %v841 = vunpack.c.h.b16 %v793
      %v842 = vpack.c.b16 %v810, %v810
      %v843 = vpack.c.b16 %v811, %v811
      %v844 = vpack.c.b16 %v812, %v812
      %v845 = vpack.c.b16 %v813, %v813
      %v846 = vpack.c.b16 %v814, %v814
      %v847 = vpack.c.b16 %v815, %v815
      %v848 = vpack.c.b16 %v816, %v816
      %v849 = vpack.c.b16 %v817, %v817
      %v850 = vpack.c.b16 %v818, %v818
      %v851 = vpack.c.b16 %v819, %v819
      %v852 = vpack.c.b16 %v820, %v820
      %v853 = vpack.c.b16 %v821, %v821
      %v854 = vpack.c.b16 %v822, %v822
      %v855 = vpack.c.b16 %v823, %v823
      %v856 = vpack.c.b16 %v824, %v824
      %v857 = vpack.c.b16 %v825, %v825
      %v858 = vpack.c.b16 %v826, %v826
      %v859 = vpack.c.b16 %v827, %v827
      %v860 = vpack.c.b16 %v828, %v828
      %v861 = vpack.c.b16 %v829, %v829
      %v862 = vpack.c.b16 %v830, %v830
      %v863 = vpack.c.b16 %v831, %v831
      %v864 = vpack.c.b16 %v832, %v832
      %v865 = vpack.c.b16 %v833, %v833
      %v866 = vpack.c.b16 %v834, %v834
      %v867 = vpack.c.b16 %v835, %v835
      %v868 = vpack.c.b16 %v836, %v836
      %v869 = vpack.c.b16 %v837, %v837
      %v870 = vpack.c.b16 %v838, %v838
      %v871 = vpack.c.b16 %v839, %v839
      %v872 = vpack.c.b16 %v840, %v840
      %v873 = vpack.c.b16 %v841, %v841
      %906 = vst [vmem:[%s194] sm:$0xf] %v842
      %907 = vst [vmem:[%s194 + $0x4] sm:$0xf] %v843
      %908 = vst [vmem:[%s194 + $0x8] sm:$0xf] %v844
      %909 = vst [vmem:[%s194 + $0xc] sm:$0xf] %v845
      %910 = vst [vmem:[%s194 + $0x10] sm:$0xf] %v846
      %911 = vst [vmem:[%s194 + $0x14] sm:$0xf] %v847
      %912 = vst [vmem:[%s194 + $0x18] sm:$0xf] %v848
      %913 = vst [vmem:[%s194 + $0x1c] sm:$0xf] %v849
      %914 = vst [vmem:[%s194 + $0x20] sm:$0xf] %v850
      %915 = vst [vmem:[%s194 + $0x24] sm:$0xf] %v851
      %916 = vst [vmem:[%s194 + $0x28] sm:$0xf] %v852
      %917 = vst [vmem:[%s194 + $0x2c] sm:$0xf] %v853
      %918 = vst [vmem:[%s194 + $0x30] sm:$0xf] %v854
      %919 = vst [vmem:[%s194 + $0x34] sm:$0xf] %v855
      %920 = vst [vmem:[%s194 + $0x38] sm:$0xf] %v856
      %921 = vst [vmem:[%s194 + $0x3c] sm:$0xf] %v857
      %922 = vst [vmem:[%s194 + $0x40] sm:$0xf] %v858
      %923 = vst [vmem:[%s194 + $0x44] sm:$0xf] %v859
      %924 = vst [vmem:[%s194 + $0x48] sm:$0xf] %v860
      %925 = vst [vmem:[%s194 + $0x4c] sm:$0xf] %v861
      %926 = vst [vmem:[%s194 + $0x50] sm:$0xf] %v862
      %927 = vst [vmem:[%s194 + $0x54] sm:$0xf] %v863
      %928 = vst [vmem:[%s194 + $0x58] sm:$0xf] %v864
      %929 = vst [vmem:[%s194 + $0x5c] sm:$0xf] %v865
      %930 = vst [vmem:[%s194 + $0x60] sm:$0xf] %v866
      %931 = vst [vmem:[%s194 + $0x64] sm:$0xf] %v867
      %932 = vst [vmem:[%s194 + $0x68] sm:$0xf] %v868
      %933 = vst [vmem:[%s194 + $0x6c] sm:$0xf] %v869
      %934 = vst [vmem:[%s194 + $0x70] sm:$0xf] %v870
      %935 = vst [vmem:[%s194 + $0x74] sm:$0xf] %v871
      %936 = vst [vmem:[%s194 + $0x78] sm:$0xf] %v872
      %937 = vst [vmem:[%s194 + $0x7c] sm:$0xf] %v873
      %s938 = smul.u32 32, %s14
      %p939 = scmp.lt.s32.totalorder %s938, 63
      %s940 = scalar_select %p939, %s938, 63
      %s941 = smul.addr %s940, 4
      %s942 = scalar_lea.vmem %s3, %s941
      // Predicated region
      $region33: #{gcn_forward.2} parent=31 // pred_check
        %p943 = pneg %p105
      $region34: #{gcn_forward.2} parent=31 // pred_check_branch
        %945 = sbr.rel (%p943) target = $region36
      $region35: #{gcn_forward.2} parent=31 // pred_region
        %s946 = smul.u32 32, %s14
      $region36: #{gcn_forward.2} parent=31 // pred_fallthru
        _
    $region32: #{gcn_forward.2} parent=5 // pred_fallthru
      _
    %p947 = scmp.le.s32.totalorder 2, %s9
    // Predicated region
    $region37: #{gcn_forward.2} parent=5 // pred_check
      %p948 = pneg %p947
    $region38: #{gcn_forward.2} parent=5 // pred_check_branch
      %950 = sbr.rel (%p948) target = $region40
    $region39: #{gcn_forward.2} parent=5 // pred_region
      %s951 = ssub.s32 %s9, 2
      // Predicated region
      $region41: #{gcn_forward.2} parent=39 // pred_check
        %p952 = pneg %p111
      $region42: #{gcn_forward.2} parent=39 // pred_check_branch
        %954 = sbr.rel (%p952) target = $region44
      $region43: #{gcn_forward.2} parent=39 // pred_region
        %s955 = smul.u32 32, %s15
        %p956 = scmp.lt.s32.totalorder %s955, 63
        %s957 = scalar_select %p956, %s955, 63
        %s958 = smul.addr %s957, 4
        %s959 = scalar_lea.vmem %s3, %s958
      $region44: #{gcn_forward.2} parent=39 // pred_fallthru
        _
    $region40: #{gcn_forward.2} parent=5 // pred_fallthru
      _
  $region6: #{gcn_forward.2} parent=0 // loop_footer
    %s13 = sadd.s32 1, %s9
  $region7: #{gcn_forward.2} parent=0 // loop_footer_branch
    %8 = sbr.rel target = $region3
  $region8: #{gcn_forward.2} parent=0 // loop_exit
    _

// kernel: gcn_forward.3
$region0: #{gcn_forward.3}
  #allocation0 [shape = 'u32[]', space=smem, size = 0x4, offset = 0x4, fixed_abs, tag = 'smem constant byte address 0x4 - core index']
  #allocation1 [shape = 'u32[144,128]{1,0:T(1,128)}', space=vmem, size = 0x12000, scoped, tag = 'internal scratch']
  #allocation2 [shape = 'f32[1]{0:T(128)S(6)}', space=smem, size = 0x200, scoped, tag = 'scoped memory for gcn_forward.3']
  %s0 = inlined_call_operand.vmem [shape: s8[512,512], index: 0, kind: input, shape index: {}]
  %s1 = inlined_call_operand.vmem [shape: bf16[512,128], index: 1, kind: input, shape index: {}]
  %s2 = inlined_call_operand.vmem [shape: f32[512,1], index: 2, kind: input, shape index: {}]
  %s3 = inlined_call_operand.vmem [shape: f32[1,128], index: 3, kind: input, shape index: {}]
  %s4 = inlined_call_operand.<no memory space> [shape: f32[1], index: 4, kind: input, shape index: {}]
  %s5 = inlined_call_operand.vmem [shape: f32[512,128], index: 5, kind: output, shape index: {}]
  %s6 = sld [smem:[#allocation0]]
  $region61: #{gcn_forward.3} parent=0
    _
  %s8 = ssub.s32 1, %s6
  %s9 = scalar_select 0, %s8, %s6
  %10 = sst [smem:[#allocation2]] %s4
  loop: start=0, step=1, limit=4
  $region2: #{gcn_forward.3} parent=0 // loop_pre_header
    _
  $region3: #{gcn_forward.3} parent=0 // loop_header
    %s12 = sphi 0, %s16
    %p13 = scmp.ge.s32.totalorder %s12, 4
    %s19 = sphi 0, %s31
    %s20 = sphi 0, %s27
    %s21 = sphi 0, %s19
    %s22 = sphi 0, %s20
    %s23 = sphi 0, %s21
    %s24 = sphi 0, %s22
    %s36 = sphi 0, %s38
    %s39 = sphi 0, %s36
    %s40 = sphi 0, %s39
    %s56 = sphi 0, %s40
    %s60 = sphi 0, %s60
    %s62 = sphi 0, %s60
    %s63 = sphi 0, %s62
    %s77 = sphi 0, %s63
    %s83 = sphi 0, %s85
    %s86 = sphi 0, %s83
    %s87 = sphi 0, %s86
    %s103 = sphi 0, %s87
    %s107 = sphi 0, %s107
    %s109 = sphi 0, %s107
    %s110 = sphi 0, %s109
    %s124 = sphi 0, %s110
    %s128 = sphi 0, %s128
    %s130 = sphi 0, %s128
    %s131 = sphi 0, %s130
    %s145 = sphi 0, %s131
    %s151 = sphi 0, %s153
    %s154 = sphi 0, %s151
    %s155 = sphi 0, %s154
    %s171 = sphi 0, %s155
  $region4: #{gcn_forward.3} parent=0 // loop_header_branch
    %15 = sbr.rel (%p13) target = $region8
  $region5: #{gcn_forward.3} parent=0 // loop_body
    %s17 = ssub.s32 %s12, 1
    %s18 = ssub.s32 %s12, 2
    %s25 = sadd.s32 1, %s20
    %p26 = scmp.ge.s32.totalorder %s25, 1
    %s27 = scalar_select %p26, 0, %s25
    %s28 = sadd.s32 1, %s19
    %s29 = scalar_select %p26, %s28, %s19
    %p30 = scmp.ge.s32.totalorder %s29, 2
    %s31 = scalar_select %p30, 0, %s29
    %s32 = ssub.s32 %s19, %s31
    %s33 = ssub.s32 %s20, %s27
    %s34 = sor.u32 %s32, %s33
    %p35 = scmp.eq.s32.totalorder %s34, 0
    %s37 = sadd.s32 %s36, 1
    %s38 = scalar_select %p35, %s36, %s37
    %p41 = pneg %p35
    %p42 = scmp.eq.s32.totalorder %s12, 1
    %p43 = por %p41, %p42
    %p44 = scmp.ne.s32.totalorder %s36, %s39
    %p45 = scmp.eq.s32.totalorder %s12, 0
    %p46 = por %p44, %p45
    %p47 = scmp.ne.s32.totalorder %s36, %s39
    %p48 = scmp.eq.s32.totalorder %s17, 1
    %p49 = por %p47, %p48
    %p50 = scmp.ne.s32.totalorder %s39, %s40
    %p51 = scmp.eq.s32.totalorder %s17, 0
    %p52 = por %p50, %p51
    %p53 = scmp.ne.s32.totalorder %s39, %s40
    %p54 = scmp.eq.s32.totalorder %s18, 1
    %p55 = por %p53, %p54
    %p57 = scmp.ne.s32.totalorder %s40, %s56
    %p58 = scmp.eq.s32.totalorder %s18, 0
    %p59 = por %p57, %p58
    %s61 = sadd.s32 %s60, 1
    %p64 = scmp.eq.s32.totalorder %s12, 1
    %p65 = scmp.ne.s32.totalorder %s60, %s62
    %p66 = scmp.eq.s32.totalorder %s12, 0
    %p67 = por %p65, %p66
    %p68 = scmp.ne.s32.totalorder %s60, %s62
    %p69 = scmp.eq.s32.totalorder %s17, 1
    %p70 = por %p68, %p69
    %p71 = scmp.ne.s32.totalorder %s62, %s63
    %p72 = scmp.eq.s32.totalorder %s17, 0
    %p73 = por %p71, %p72
    %p74 = scmp.ne.s32.totalorder %s62, %s63
    %p75 = scmp.eq.s32.totalorder %s18, 1
    %p76 = por %p74, %p75
    %p78 = scmp.ne.s32.totalorder %s63, %s77
    %p79 = scmp.eq.s32.totalorder %s18, 0
    %p80 = por %p78, %p79
    %s81 = ssub.s32 %s19, %s31
    %p82 = scmp.eq.s32.totalorder %s81, 0
    %s84 = sadd.s32 %s83, 1
    %s85 = scalar_select %p82, %s83, %s84
    %p88 = pneg %p82
    %p89 = scmp.eq.s32.totalorder %s12, 1
    %p90 = por %p88, %p89
    %p91 = scmp.ne.s32.totalorder %s83, %s86
    %p92 = scmp.eq.s32.totalorder %s12, 0
    %p93 = por %p91, %p92
    %p94 = scmp.ne.s32.totalorder %s83, %s86
    %p95 = scmp.eq.s32.totalorder %s17, 1
    %p96 = por %p94, %p95
    %p97 = scmp.ne.s32.totalorder %s86, %s87
    %p98 = scmp.eq.s32.totalorder %s17, 0
    %p99 = por %p97, %p98
    %p100 = scmp.ne.s32.totalorder %s86, %s87
    %p101 = scmp.eq.s32.totalorder %s18, 1
    %p102 = por %p100, %p101
    %p104 = scmp.ne.s32.totalorder %s87, %s103
    %p105 = scmp.eq.s32.totalorder %s18, 0
    %p106 = por %p104, %p105
    %s108 = sadd.s32 %s107, 1
    %p111 = scmp.eq.s32.totalorder %s12, 1
    %p112 = scmp.ne.s32.totalorder %s107, %s109
    %p113 = scmp.eq.s32.totalorder %s12, 0
    %p114 = por %p112, %p113
    %p115 = scmp.ne.s32.totalorder %s107, %s109
    %p116 = scmp.eq.s32.totalorder %s17, 1
    %p117 = por %p115, %p116
    %p118 = scmp.ne.s32.totalorder %s109, %s110
    %p119 = scmp.eq.s32.totalorder %s17, 0
    %p120 = por %p118, %p119
    %p121 = scmp.ne.s32.totalorder %s109, %s110
    %p122 = scmp.eq.s32.totalorder %s18, 1
    %p123 = por %p121, %p122
    %p125 = scmp.ne.s32.totalorder %s110, %s124
    %p126 = scmp.eq.s32.totalorder %s18, 0
    %p127 = por %p125, %p126
    %s129 = sadd.s32 %s128, 1
    %p132 = scmp.eq.s32.totalorder %s12, 1
    %p133 = scmp.ne.s32.totalorder %s128, %s130
    %p134 = scmp.eq.s32.totalorder %s12, 0
    %p135 = por %p133, %p134
    %p136 = scmp.ne.s32.totalorder %s128, %s130
    %p137 = scmp.eq.s32.totalorder %s17, 1
    %p138 = por %p136, %p137
    %p139 = scmp.ne.s32.totalorder %s130, %s131
    %p140 = scmp.eq.s32.totalorder %s17, 0
    %p141 = por %p139, %p140
    %p142 = scmp.ne.s32.totalorder %s130, %s131
    %p143 = scmp.eq.s32.totalorder %s18, 1
    %p144 = por %p142, %p143
    %p146 = scmp.ne.s32.totalorder %s131, %s145
    %p147 = scmp.eq.s32.totalorder %s18, 0
    %p148 = por %p146, %p147
    %s149 = ssub.s32 %s19, %s31
    %p150 = scmp.eq.s32.totalorder %s149, 0
    %s152 = sadd.s32 %s151, 1
    %s153 = scalar_select %p150, %s151, %s152
    %p156 = pneg %p150
    %p157 = scmp.eq.s32.totalorder %s12, 1
    %p158 = por %p156, %p157
    %p159 = scmp.ne.s32.totalorder %s151, %s154
    %p160 = scmp.eq.s32.totalorder %s12, 0
    %p161 = por %p159, %p160
    %p162 = scmp.ne.s32.totalorder %s151, %s154
    %p163 = scmp.eq.s32.totalorder %s17, 1
    %p164 = por %p162, %p163
    %p165 = scmp.ne.s32.totalorder %s154, %s155
    %p166 = scmp.eq.s32.totalorder %s17, 0
    %p167 = por %p165, %p166
    %p168 = scmp.ne.s32.totalorder %s154, %s155
    %p169 = scmp.eq.s32.totalorder %s18, 1
    %p170 = por %p168, %p169
    %p172 = scmp.ne.s32.totalorder %s155, %s171
    %p173 = scmp.eq.s32.totalorder %s18, 0
    %p174 = por %p172, %p173
    %p175 = scmp.le.s32.totalorder 1, %s12
    %p176 = scmp.lt.s32.totalorder %s12, 3
    %p177 = pnand %p175, %p176
    %p178 = pneg %p177
    // Predicated region
    $region9: #{gcn_forward.3} parent=5 // pred_check
      _
    $region10: #{gcn_forward.3} parent=5 // pred_check_branch
      %180 = sbr.rel (%p177) target = $region12
    $region11: #{gcn_forward.3} parent=5 // pred_region
      %s181 = ssub.s32 %s12, 1
      // Predicated region
      $region13: #{gcn_forward.3} parent=11 // pred_check
        %p182 = pneg %p73
      $region14: #{gcn_forward.3} parent=11 // pred_check_branch
        %184 = sbr.rel (%p182) target = $region16
      $region15: #{gcn_forward.3} parent=11 // pred_region
        _
      $region16: #{gcn_forward.3} parent=11 // pred_fallthru
        _
      // Predicated region
      $region17: #{gcn_forward.3} parent=11 // pred_check
        %p185 = pneg %p120
      $region18: #{gcn_forward.3} parent=11 // pred_check_branch
        %187 = sbr.rel (%p185) target = $region20
      $region19: #{gcn_forward.3} parent=11 // pred_region
        _
      $region20: #{gcn_forward.3} parent=11 // pred_fallthru
        _
      // Predicated region
      $region21: #{gcn_forward.3} parent=11 // pred_check
        %p188 = pneg %p141
      $region22: #{gcn_forward.3} parent=11 // pred_check_branch
        %190 = sbr.rel (%p188) target = $region24
      $region23: #{gcn_forward.3} parent=11 // pred_region
        _
      $region24: #{gcn_forward.3} parent=11 // pred_fallthru
        _
    $region12: #{gcn_forward.3} parent=5 // pred_fallthru
      _
    %p191 = scmp.lt.s32.totalorder %s12, 2
    // Predicated region
    $region25: #{gcn_forward.3} parent=5 // pred_check
      %p192 = pneg %p191
    $region26: #{gcn_forward.3} parent=5 // pred_check_branch
      %194 = sbr.rel (%p192) target = $region28
    $region27: #{gcn_forward.3} parent=5 // pred_region
      // Predicated region
      $region29: #{gcn_forward.3} parent=27 // pred_check
        %p195 = pneg %p46
      $region30: #{gcn_forward.3} parent=27 // pred_check_branch
        %197 = sbr.rel (%p195) target = $region32
      $region31: #{gcn_forward.3} parent=27 // pred_region
        %s198 = smul.u32 8, %s19
        %s199 = smul.u32 4, %s20
        %p200 = scmp.lt.s32.totalorder %s198, 15
        %s201 = scalar_select %p200, %s198, 15
        %p202 = scmp.lt.s32.totalorder %s199, 3
        %s203 = scalar_select %p202, %s199, 3
        %s204 = smul.addr %s201, 4
        %s205 = sadd.s32 %s203, %s204
        %s206 = smul.addr %s205, 8
        %s207 = scalar_lea.vmem %s0, %s206
        %s208 = smul.u32 8, %s19
        %s209 = smul.u32 4, %s20
      $region32: #{gcn_forward.3} parent=27 // pred_fallthru
        _
      // Predicated region
      $region33: #{gcn_forward.3} parent=27 // pred_check
        %p210 = pneg %p93
      $region34: #{gcn_forward.3} parent=27 // pred_check_branch
        %212 = sbr.rel (%p210) target = $region36
      $region35: #{gcn_forward.3} parent=27 // pred_region
        %s213 = smul.u32 32, %s19
        %p214 = scmp.lt.s32.totalorder %s213, 63
        %s215 = scalar_select %p214, %s213, 63
        %s216 = smul.addr %s215, 8
        %s217 = scalar_lea.vmem %s2, %s216
        %s218 = smul.u32 32, %s19
      $region36: #{gcn_forward.3} parent=27 // pred_fallthru
        _
    $region28: #{gcn_forward.3} parent=5 // pred_fallthru
      _
    %p219 = scmp.le.s32.totalorder 1, %s12
    %p220 = scmp.lt.s32.totalorder %s12, 3
    %p221 = pnand %p219, %p220
    %p222 = pneg %p221
    // Predicated region
    $region37: #{gcn_forward.3} parent=5 // pred_check
      _
    $region38: #{gcn_forward.3} parent=5 // pred_check_branch
      %224 = sbr.rel (%p221) target = $region40
    $region39: #{gcn_forward.3} parent=5 // pred_region
      %s225 = ssub.s32 %s12, 1
      %s226 = smul.u32 8, %s21
      %s227 = smul.u32 4, %s22
      %p228 = scmp.lt.s32.totalorder %s226, 15
      %s229 = scalar_select %p228, %s226, 15
      %p230 = scmp.lt.s32.totalorder %s227, 3
      %s231 = scalar_select %p230, %s227, 3
      %s232 = smul.addr %s229, 4
      %s233 = sadd.s32 %s231, %s232
      %s234 = smul.addr %s233, 8
      %s235 = scalar_lea.vmem %s0, %s234
      %p236 = pneg %p52
      %p237 = pneg %p49
      %p238 = pneg %p73
      %p239 = pneg %p70
      %s240 = smul.u32 32, %s21
      %p241 = scmp.lt.s32.totalorder %s240, 63
      %s242 = scalar_select %p241, %s240, 63
      %s243 = smul.addr %s242, 8
      %s244 = scalar_lea.vmem %s2, %s243
      %p245 = pneg %p99
      %p246 = pneg %p96
      %p247 = pneg %p120
      %p248 = pneg %p117
      %p249 = pneg %p141
      %p250 = pneg %p138
      %p251 = pneg %p167
      %p252 = pneg %p164
      %s253 = smul.u32 32, %s21
      %p254 = scmp.lt.s32.totalorder %s253, 63
      %s255 = scalar_select %p254, %s253, 63
      %s256 = smul.addr %s255, 8
      %s257 = scalar_lea.vmem %s5, %s256
      %s258 = smul.u32 8, %s21
      %s259 = smul.u32 4, %s22
      %p260 = scmp.lt.s32.totalorder %s258, 15
      %s261 = scalar_select %p260, %s258, 15
      %p262 = scmp.lt.s32.totalorder %s259, 3
      %s263 = scalar_select %p262, %s259, 3
      %s264 = smul.addr %s261, 4
      %s265 = sadd.s32 %s263, %s264
      %s266 = smul.addr %s265, 8
      %s267 = scalar_lea.vmem %s0, %s266
      %s268 = smul.u32 8, %s21
      %s269 = smul.u32 4, %s22
      %s270 = smul.u32 32, %s21
      %p271 = scmp.lt.s32.totalorder %s270, 63
      %s272 = scalar_select %p271, %s270, 63
      %s273 = smul.addr %s272, 8
      %s274 = scalar_lea.vmem %s2, %s273
      %s275 = smul.u32 32, %s21
      %s276 = smul.u32 32, %s21
      %p277 = scmp.lt.s32.totalorder %s276, 63
      %s278 = scalar_select %p277, %s276, 63
      %s279 = smul.addr %s278, 8
      %s280 = scalar_lea.vmem %s5, %s279
      %s281 = smul.u32 32, %s21
      %p283 = scmp.eq.s32.totalorder %s22, 0
      // Predicated region
      $region41: #{gcn_forward.3} parent=39 // pred_check
        %p284 = pneg %p283
      $region42: #{gcn_forward.3} parent=39 // pred_check_branch
        %286 = sbr.rel (%p284) target = $region44
      $region43: #{gcn_forward.3} parent=39 // pred_region
        %287 = vst [vmem:[%s280] sm:$0xff] 0.0
        %288 = vst [vmem:[%s280 + $0x8] sm:$0xff] 0.0
        %289 = vst [vmem:[%s280 + $0x10] sm:$0xff] 0.0
        %290 = vst [vmem:[%s280 + $0x18] sm:$0xff] 0.0
        %291 = vst [vmem:[%s280 + $0x20] sm:$0xff] 0.0
        %292 = vst [vmem:[%s280 + $0x28] sm:$0xff] 0.0
        %293 = vst [vmem:[%s280 + $0x30] sm:$0xff] 0.0
        %294 = vst [vmem:[%s280 + $0x38] sm:$0xff] 0.0
        %295 = vst [vmem:[%s280 + $0x40] sm:$0xff] 0.0
        %296 = vst [vmem:[%s280 + $0x48] sm:$0xff] 0.0
        %297 = vst [vmem:[%s280 + $0x50] sm:$0xff] 0.0
        %298 = vst [vmem:[%s280 + $0x58] sm:$0xff] 0.0
        %299 = vst [vmem:[%s280 + $0x60] sm:$0xff] 0.0
        %300 = vst [vmem:[%s280 + $0x68] sm:$0xff] 0.0
        %301 = vst [vmem:[%s280 + $0x70] sm:$0xff] 0.0
        %302 = vst [vmem:[%s280 + $0x78] sm:$0xff] 0.0
        %303 = vst [vmem:[%s280 + $0x80] sm:$0xff] 0.0
        %304 = vst [vmem:[%s280 + $0x88] sm:$0xff] 0.0
        %305 = vst [vmem:[%s280 + $0x90] sm:$0xff] 0.0
        %306 = vst [vmem:[%s280 + $0x98] sm:$0xff] 0.0
        %307 = vst [vmem:[%s280 + $0xa0] sm:$0xff] 0.0
        %308 = vst [vmem:[%s280 + $0xa8] sm:$0xff] 0.0
        %309 = vst [vmem:[%s280 + $0xb0] sm:$0xff] 0.0
        %310 = vst [vmem:[%s280 + $0xb8] sm:$0xff] 0.0
        %311 = vst [vmem:[%s280 + $0xc0] sm:$0xff] 0.0
        %312 = vst [vmem:[%s280 + $0xc8] sm:$0xff] 0.0
        %313 = vst [vmem:[%s280 + $0xd0] sm:$0xff] 0.0
        %314 = vst [vmem:[%s280 + $0xd8] sm:$0xff] 0.0
        %315 = vst [vmem:[%s280 + $0xe0] sm:$0xff] 0.0
        %316 = vst [vmem:[%s280 + $0xe8] sm:$0xff] 0.0
        %317 = vst [vmem:[%s280 + $0xf0] sm:$0xff] 0.0
        %318 = vst [vmem:[%s280 + $0xf8] sm:$0xff] 0.0
      $region44: #{gcn_forward.3} parent=39 // pred_fallthru
        _
      %v319 = vld [vmem:[%s267] sm:$0xff]
      %v320 = vld [vmem:[%s267 + $0x8] sm:$0xff]
      %v321 = vld [vmem:[%s267 + $0x10] sm:$0xff]
      %v322 = vld [vmem:[%s267 + $0x18] sm:$0xff]
      %v323 = vld [vmem:[%s267 + $0x20] sm:$0xff]
      %v324 = vld [vmem:[%s267 + $0x28] sm:$0xff]
      %v325 = vld [vmem:[%s267 + $0x30] sm:$0xff]
      %v326 = vld [vmem:[%s267 + $0x38] sm:$0xff]
      %v327 = vld [vmem:[%s267 + $0x40] sm:$0xff]
      %v328 = vld [vmem:[%s267 + $0x48] sm:$0xff]
      %v329 = vld [vmem:[%s267 + $0x50] sm:$0xff]
      %v330 = vld [vmem:[%s267 + $0x58] sm:$0xff]
      %v331 = vld [vmem:[%s267 + $0x60] sm:$0xff]
      %v332 = vld [vmem:[%s267 + $0x68] sm:$0xff]
      %v333 = vld [vmem:[%s267 + $0x70] sm:$0xff]
      %v334 = vld [vmem:[%s267 + $0x78] sm:$0xff]
      %v335 = vld [vmem:[%s267 + $0x80] sm:$0xff]
      %v336 = vld [vmem:[%s267 + $0x88] sm:$0xff]
      %v337 = vld [vmem:[%s267 + $0x90] sm:$0xff]
      %v338 = vld [vmem:[%s267 + $0x98] sm:$0xff]
      %v339 = vld [vmem:[%s267 + $0xa0] sm:$0xff]
      %v340 = vld [vmem:[%s267 + $0xa8] sm:$0xff]
      %v341 = vld [vmem:[%s267 + $0xb0] sm:$0xff]
      %v342 = vld [vmem:[%s267 + $0xb8] sm:$0xff]
      %v343 = vld [vmem:[%s267 + $0xc0] sm:$0xff]
      %v344 = vld [vmem:[%s267 + $0xc8] sm:$0xff]
      %v345 = vld [vmem:[%s267 + $0xd0] sm:$0xff]
      %v346 = vld [vmem:[%s267 + $0xd8] sm:$0xff]
      %v347 = vld [vmem:[%s267 + $0xe0] sm:$0xff]
      %v348 = vld [vmem:[%s267 + $0xe8] sm:$0xff]
      %v349 = vld [vmem:[%s267 + $0xf0] sm:$0xff]
      %v350 = vld [vmem:[%s267 + $0xf8] sm:$0xff]
      %v351 = vunpack.c.l.s8.bf16 %v319
      %v352 = vunpack.c.l.s8.bf16 %v320
      %v353 = vunpack.c.l.s8.bf16 %v321
      %v354 = vunpack.c.l.s8.bf16 %v322
      %v355 = vunpack.c.h.s8.bf16 %v319
      %v356 = vunpack.c.h.s8.bf16 %v320
      %v357 = vunpack.c.h.s8.bf16 %v321
      %v358 = vunpack.c.h.s8.bf16 %v322
      %v359 = vunpack.c.l.s8.bf16 %v323
      %v360 = vunpack.c.l.s8.bf16 %v324
      %v361 = vunpack.c.l.s8.bf16 %v325
      %v362 = vunpack.c.l.s8.bf16 %v326
      %v363 = vunpack.c.h.s8.bf16 %v323
      %v364 = vunpack.c.h.s8.bf16 %v324
      %v365 = vunpack.c.h.s8.bf16 %v325
      %v366 = vunpack.c.h.s8.bf16 %v326
      %v367 = vunpack.c.l.s8.bf16 %v327
      %v368 = vunpack.c.l.s8.bf16 %v328
      %v369 = vunpack.c.l.s8.bf16 %v329
      %v370 = vunpack.c.l.s8.bf16 %v330
      %v371 = vunpack.c.h.s8.bf16 %v327
      %v372 = vunpack.c.h.s8.bf16 %v328
      %v373 = vunpack.c.h.s8.bf16 %v329
      %v374 = vunpack.c.h.s8.bf16 %v330
      %v375 = vunpack.c.l.s8.bf16 %v331
      %v376 = vunpack.c.l.s8.bf16 %v332
      %v377 = vunpack.c.l.s8.bf16 %v333
      %v378 = vunpack.c.l.s8.bf16 %v334
      %v379 = vunpack.c.h.s8.bf16 %v331
      %v380 = vunpack.c.h.s8.bf16 %v332
      %v381 = vunpack.c.h.s8.bf16 %v333
      %v382 = vunpack.c.h.s8.bf16 %v334
      %v383 = vunpack.c.l.s8.bf16 %v335
      %v384 = vunpack.c.l.s8.bf16 %v336
      %v385 = vunpack.c.l.s8.bf16 %v337
      %v386 = vunpack.c.l.s8.bf16 %v338
      %v387 = vunpack.c.h.s8.bf16 %v335
      %v388 = vunpack.c.h.s8.bf16 %v336
      %v389 = vunpack.c.h.s8.bf16 %v337
      %v390 = vunpack.c.h.s8.bf16 %v338
      %v391 = vunpack.c.l.s8.bf16 %v339
      %v392 = vunpack.c.l.s8.bf16 %v340
      %v393 = vunpack.c.l.s8.bf16 %v341
      %v394 = vunpack.c.l.s8.bf16 %v342
      %v395 = vunpack.c.h.s8.bf16 %v339
      %v396 = vunpack.c.h.s8.bf16 %v340
      %v397 = vunpack.c.h.s8.bf16 %v341
      %v398 = vunpack.c.h.s8.bf16 %v342
      %v399 = vunpack.c.l.s8.bf16 %v343
      %v400 = vunpack.c.l.s8.bf16 %v344
      %v401 = vunpack.c.l.s8.bf16 %v345
      %v402 = vunpack.c.l.s8.bf16 %v346
      %v403 = vunpack.c.h.s8.bf16 %v343
      %v404 = vunpack.c.h.s8.bf16 %v344
      %v405 = vunpack.c.h.s8.bf16 %v345
      %v406 = vunpack.c.h.s8.bf16 %v346
      %v407 = vunpack.c.l.s8.bf16 %v347
      %v408 = vunpack.c.l.s8.bf16 %v348
      %v409 = vunpack.c.l.s8.bf16 %v349
      %v410 = vunpack.c.l.s8.bf16 %v350
      %v411 = vunpack.c.h.s8.bf16 %v347
      %v412 = vunpack.c.h.s8.bf16 %v348
      %v413 = vunpack.c.h.s8.bf16 %v349
      %v414 = vunpack.c.h.s8.bf16 %v350
      %s415 = smul.u32 %s22, 512
      %s416 = sshra.s32 %s415, 3
      %s417 = sand.u32 %s415, 7
      %s418 = smul.addr %s416, 4
      %s419 = scalar_lea.vmem %s1, %s418
      %v420 = vld [vmem:[%s419] sm:$0xf]
      %v421 = vld [vmem:[%s419 + $0x4] sm:$0xf]
      %v422 = vld [vmem:[%s419 + $0x8] sm:$0xf]
      %v423 = vld [vmem:[%s419 + $0xc] sm:$0xf]
      %v424 = vld [vmem:[%s419 + $0x10] sm:$0xf]
      %v425 = vld [vmem:[%s419 + $0x14] sm:$0xf]
      %v426 = vld [vmem:[%s419 + $0x18] sm:$0xf]
      %v427 = vld [vmem:[%s419 + $0x1c] sm:$0xf]
      %v428 = vld [vmem:[%s419 + $0x20] sm:$0xf]
      %v429 = vld [vmem:[%s419 + $0x24] sm:$0xf]
      %v430 = vld [vmem:[%s419 + $0x28] sm:$0xf]
      %v431 = vld [vmem:[%s419 + $0x2c] sm:$0xf]
      %v432 = vld [vmem:[%s419 + $0x30] sm:$0xf]
      %v433 = vld [vmem:[%s419 + $0x34] sm:$0xf]
      %v434 = vld [vmem:[%s419 + $0x38] sm:$0xf]
      %v435 = vld [vmem:[%s419 + $0x3c] sm:$0xf]
      %v436 = vld [vmem:[%s419 + $0x40] sm:$0xf]
      %v437 = vld [vmem:[%s419 + $0x44] sm:$0xf]
      %v438 = vld [vmem:[%s419 + $0x48] sm:$0xf]
      %v439 = vld [vmem:[%s419 + $0x4c] sm:$0xf]
      %v440 = vld [vmem:[%s419 + $0x50] sm:$0xf]
      %v441 = vld [vmem:[%s419 + $0x54] sm:$0xf]
      %v442 = vld [vmem:[%s419 + $0x58] sm:$0xf]
      %v443 = vld [vmem:[%s419 + $0x5c] sm:$0xf]
      %v444 = vld [vmem:[%s419 + $0x60] sm:$0xf]
      %v445 = vld [vmem:[%s419 + $0x64] sm:$0xf]
      %v446 = vld [vmem:[%s419 + $0x68] sm:$0xf]
      %v447 = vld [vmem:[%s419 + $0x6c] sm:$0xf]
      %v448 = vld [vmem:[%s419 + $0x70] sm:$0xf]
      %v449 = vld [vmem:[%s419 + $0x74] sm:$0xf]
      %v450 = vld [vmem:[%s419 + $0x78] sm:$0xf]
      %v451 = vld [vmem:[%s419 + $0x7c] sm:$0xf]
      %v452 = vld [vmem:[%s419 + $0x80] sm:$0xf]
      %v453 = vld [vmem:[%s419 + $0x84] sm:$0xf]
      %v454 = vld [vmem:[%s419 + $0x88] sm:$0xf]
      %v455 = vld [vmem:[%s419 + $0x8c] sm:$0xf]
      %v456 = vld [vmem:[%s419 + $0x90] sm:$0xf]
      %v457 = vld [vmem:[%s419 + $0x94] sm:$0xf]
      %v458 = vld [vmem:[%s419 + $0x98] sm:$0xf]
      %v459 = vld [vmem:[%s419 + $0x9c] sm:$0xf]
      %v460 = vld [vmem:[%s419 + $0xa0] sm:$0xf]
      %v461 = vld [vmem:[%s419 + $0xa4] sm:$0xf]
      %v462 = vld [vmem:[%s419 + $0xa8] sm:$0xf]
      %v463 = vld [vmem:[%s419 + $0xac] sm:$0xf]
      %v464 = vld [vmem:[%s419 + $0xb0] sm:$0xf]
      %v465 = vld [vmem:[%s419 + $0xb4] sm:$0xf]
      %v466 = vld [vmem:[%s419 + $0xb8] sm:$0xf]
      %v467 = vld [vmem:[%s419 + $0xbc] sm:$0xf]
      %v468 = vld [vmem:[%s419 + $0xc0] sm:$0xf]
      %v469 = vld [vmem:[%s419 + $0xc4] sm:$0xf]
      %v470 = vld [vmem:[%s419 + $0xc8] sm:$0xf]
      %v471 = vld [vmem:[%s419 + $0xcc] sm:$0xf]
      %v472 = vld [vmem:[%s419 + $0xd0] sm:$0xf]
      %v473 = vld [vmem:[%s419 + $0xd4] sm:$0xf]
      %v474 = vld [vmem:[%s419 + $0xd8] sm:$0xf]
      %v475 = vld [vmem:[%s419 + $0xdc] sm:$0xf]
      %v476 = vld [vmem:[%s419 + $0xe0] sm:$0xf]
      %v477 = vld [vmem:[%s419 + $0xe4] sm:$0xf]
      %v478 = vld [vmem:[%s419 + $0xe8] sm:$0xf]
      %v479 = vld [vmem:[%s419 + $0xec] sm:$0xf]
      %v480 = vld [vmem:[%s419 + $0xf0] sm:$0xf]
      %v481 = vld [vmem:[%s419 + $0xf4] sm:$0xf]
      %v482 = vld [vmem:[%s419 + $0xf8] sm:$0xf]
      %v483 = vld [vmem:[%s419 + $0xfc] sm:$0xf]
      %v484 = vld [vmem:[%s280] sm:$0xff]
      %v485 = vld [vmem:[%s280 + $0x8] sm:$0xff]
      %v486 = vld [vmem:[%s280 + $0x10] sm:$0xff]
      %v487 = vld [vmem:[%s280 + $0x18] sm:$0xff]
      %v488 = vld [vmem:[%s280 + $0x20] sm:$0xff]
      %v489 = vld [vmem:[%s280 + $0x28] sm:$0xff]
      %v490 = vld [vmem:[%s280 + $0x30] sm:$0xff]
      %v491 = vld [vmem:[%s280 + $0x38] sm:$0xff]
      %v492 = vld [vmem:[%s280 + $0x40] sm:$0xff]
      %v493 = vld [vmem:[%s280 + $0x48] sm:$0xff]
      %v494 = vld [vmem:[%s280 + $0x50] sm:$0xff]
      %v495 = vld [vmem:[%s280 + $0x58] sm:$0xff]
      %v496 = vld [vmem:[%s280 + $0x60] sm:$0xff]
      %v497 = vld [vmem:[%s280 + $0x68] sm:$0xff]
      %v498 = vld [vmem:[%s280 + $0x70] sm:$0xff]
      %v499 = vld [vmem:[%s280 + $0x78] sm:$0xff]
      %v500 = vld [vmem:[%s280 + $0x80] sm:$0xff]
      %v501 = vld [vmem:[%s280 + $0x88] sm:$0xff]
      %v502 = vld [vmem:[%s280 + $0x90] sm:$0xff]
      %v503 = vld [vmem:[%s280 + $0x98] sm:$0xff]
      %v504 = vld [vmem:[%s280 + $0xa0] sm:$0xff]
      %v505 = vld [vmem:[%s280 + $0xa8] sm:$0xff]
      %v506 = vld [vmem:[%s280 + $0xb0] sm:$0xff]
      %v507 = vld [vmem:[%s280 + $0xb8] sm:$0xff]
      %v508 = vld [vmem:[%s280 + $0xc0] sm:$0xff]
      %v509 = vld [vmem:[%s280 + $0xc8] sm:$0xff]
      %v510 = vld [vmem:[%s280 + $0xd0] sm:$0xff]
      %v511 = vld [vmem:[%s280 + $0xd8] sm:$0xff]
      %v512 = vld [vmem:[%s280 + $0xe0] sm:$0xff]
      %v513 = vld [vmem:[%s280 + $0xe8] sm:$0xff]
      %v514 = vld [vmem:[%s280 + $0xf0] sm:$0xff]
      %v515 = vld [vmem:[%s280 + $0xf8] sm:$0xff]
      %v580 = vunpack.c.l.b16 %v420
      %v581 = vunpack.c.l.b16 %v421
      %v582 = vunpack.c.l.b16 %v422
      %v583 = vunpack.c.l.b16 %v423
      %v584 = vunpack.c.l.b16 %v424
      %v585 = vunpack.c.l.b16 %v425
      %v586 = vunpack.c.l.b16 %v426
      %v587 = vunpack.c.l.b16 %v427
      %v588 = vunpack.c.l.b16 %v428
      %v589 = vunpack.c.l.b16 %v429
      %v590 = vunpack.c.l.b16 %v430
      %v591 = vunpack.c.l.b16 %v431
      %v592 = vunpack.c.l.b16 %v432
      %v593 = vunpack.c.l.b16 %v433
      %v594 = vunpack.c.l.b16 %v434
      %v595 = vunpack.c.l.b16 %v435
      %v596 = vunpack.c.l.b16 %v436
      %v597 = vunpack.c.l.b16 %v437
      %v598 = vunpack.c.l.b16 %v438
      %v599 = vunpack.c.l.b16 %v439
      %v600 = vunpack.c.l.b16 %v440
      %v601 = vunpack.c.l.b16 %v441
      %v602 = vunpack.c.l.b16 %v442
      %v603 = vunpack.c.l.b16 %v443
      %v604 = vunpack.c.l.b16 %v444
      %v605 = vunpack.c.l.b16 %v445
      %v606 = vunpack.c.l.b16 %v446
      %v607 = vunpack.c.l.b16 %v447
      %v608 = vunpack.c.l.b16 %v448
      %v609 = vunpack.c.l.b16 %v449
      %v610 = vunpack.c.l.b16 %v450
      %v611 = vunpack.c.l.b16 %v451
      %v612 = vunpack.c.l.b16 %v452
      %v613 = vunpack.c.l.b16 %v453
      %v614 = vunpack.c.l.b16 %v454
      %v615 = vunpack.c.l.b16 %v455
      %v616 = vunpack.c.l.b16 %v456
      %v617 = vunpack.c.l.b16 %v457
      %v618 = vunpack.c.l.b16 %v458
      %v619 = vunpack.c.l.b16 %v459
      %v620 = vunpack.c.l.b16 %v460
      %v621 = vunpack.c.l.b16 %v461
      %v622 = vunpack.c.l.b16 %v462
      %v623 = vunpack.c.l.b16 %v463
      %v624 = vunpack.c.l.b16 %v464
      %v625 = vunpack.c.l.b16 %v465
      %v626 = vunpack.c.l.b16 %v466
      %v627 = vunpack.c.l.b16 %v467
      %v628 = vunpack.c.l.b16 %v468
      %v629 = vunpack.c.l.b16 %v469
      %v630 = vunpack.c.l.b16 %v470
      %v631 = vunpack.c.l.b16 %v471
      %v632 = vunpack.c.l.b16 %v472
      %v633 = vunpack.c.l.b16 %v473
      %v634 = vunpack.c.l.b16 %v474
      %v635 = vunpack.c.l.b16 %v475
      %v636 = vunpack.c.l.b16 %v476
      %v637 = vunpack.c.l.b16 %v477
      %v638 = vunpack.c.l.b16 %v478
      %v639 = vunpack.c.l.b16 %v479
      %v640 = vunpack.c.l.b16 %v480
      %v641 = vunpack.c.l.b16 %v481
      %v642 = vunpack.c.l.b16 %v482
      %v643 = vunpack.c.l.b16 %v483
      %v644 = vpack.c.b16 %v581, %v580
      %v645 = vpack.c.b16 %v583, %v582
      %v646 = vpack.c.b16 %v585, %v584
      %v647 = vpack.c.b16 %v587, %v586
      %v648 = vpack.c.b16 %v589, %v588
      %v649 = vpack.c.b16 %v591, %v590
      %v650 = vpack.c.b16 %v593, %v592
      %v651 = vpack.c.b16 %v595, %v594
      %v652 = vpack.c.b16 %v597, %v596
      %v653 = vpack.c.b16 %v599, %v598
      %v654 = vpack.c.b16 %v601, %v600
      %v655 = vpack.c.b16 %v603, %v602
      %v656 = vpack.c.b16 %v605, %v604
      %v657 = vpack.c.b16 %v607, %v606
      %v658 = vpack.c.b16 %v609, %v608
      %v659 = vpack.c.b16 %v611, %v610
      %v660 = vpack.c.b16 %v613, %v612
      %v661 = vpack.c.b16 %v615, %v614
      %v662 = vpack.c.b16 %v617, %v616
      %v663 = vpack.c.b16 %v619, %v618
      %v664 = vpack.c.b16 %v621, %v620
      %v665 = vpack.c.b16 %v623, %v622
      %v666 = vpack.c.b16 %v625, %v624
      %v667 = vpack.c.b16 %v627, %v626
      %v668 = vpack.c.b16 %v629, %v628
      %v669 = vpack.c.b16 %v631, %v630
      %v670 = vpack.c.b16 %v633, %v632
      %v671 = vpack.c.b16 %v635, %v634
      %v672 = vpack.c.b16 %v637, %v636
      %v673 = vpack.c.b16 %v639, %v638
      %v674 = vpack.c.b16 %v641, %v640
      %v675 = vpack.c.b16 %v643, %v642
      %708 = vmatprep.subr.bf16.mxu0 0
      %709 = vmatpush1.bf16.msra.mxu0 %v651
      %710 = vmatprep.subr.bf16.mxu0 0
      %711 = vmatpush1.bf16.msra.mxu0 %v650
      %712 = vmatprep.subr.bf16.mxu0 0
      %713 = vmatpush1.bf16.msra.mxu0 %v649
      %714 = vmatprep.subr.bf16.mxu0 0
      %715 = vmatpush1.bf16.msra.mxu0 %v648
      %716 = vmatprep.subr.bf16.mxu0 0
      %717 = vmatpush1.bf16.msra.mxu0 %v647
      %718 = vmatprep.subr.bf16.mxu0 0
      %719 = vmatpush1.bf16.msra.mxu0 %v646
      %720 = vmatprep.subr.bf16.mxu0 0
      %721 = vmatpush1.bf16.msra.mxu0 %v645
      %722 = vmatprep.subr.bf16.mxu0 0
      %723 = vmatpush1.bf16.msra.mxu0 %v644
      %724 = vmatprep.subr.bf16.mxu0 0
      %725 = vmatpush2.bf16.msra.mxu0 %v659
      %726 = vmatprep.subr.bf16.mxu0 0
      %727 = vmatpush2.bf16.msra.mxu0 %v658
      %728 = vmatprep.subr.bf16.mxu0 0
      %729 = vmatpush2.bf16.msra.mxu0 %v657
      %730 = vmatprep.subr.bf16.mxu0 0
      %731 = vmatpush2.bf16.msra.mxu0 %v656
      %732 = vmatprep.subr.bf16.mxu0 0
      %733 = vmatpush2.bf16.msra.mxu0 %v655
      %734 = vmatprep.subr.bf16.mxu0 0
      %735 = vmatpush2.bf16.msra.mxu0 %v654
      %736 = vmatprep.subr.bf16.mxu0 0
      %737 = vmatpush2.bf16.msra.mxu0 %v653
      %738 = vmatprep.subr.bf16.mxu0 0
      %739 = vmatpush2.bf16.msra.mxu0 %v652
      %740 = vmatprep.mubr.bf16.mxu0 %v352
      %741 = vmatmul.mubr.bf16.gmra.mxu0 %v351
      %v742 = vpop.f32.mrf.mxu0
      %v743 = vadd.f32 0.0, %v742
      %v744 = vpop.f32.mrf.mxu0
      %v745 = vpop.f32.mrf.mxu0
      %v746 = vadd.f32 0.0, %v745
      %v747 = vpop.f32.mrf.mxu0
      %748 = vmatprep.mubr.bf16.mxu0 %v356
      %749 = vmatmul.mubr.bf16.gmra.mxu0 %v355
      %v750 = vpop.f32.mrf.mxu0
      %v751 = vadd.f32 0.0, %v750
      %v752 = vpop.f32.mrf.mxu0
      %v753 = vpop.f32.mrf.mxu0
      %v754 = vadd.f32 0.0, %v753
      %v755 = vpop.f32.mrf.mxu0
      %756 = vmatprep.mubr.bf16.mxu0 %v360
      %757 = vmatmul.mubr.bf16.gmra.mxu0 %v359
      %v758 = vpop.f32.mrf.mxu0
      %v759 = vadd.f32 0.0, %v758
      %v760 = vpop.f32.mrf.mxu0
      %v761 = vpop.f32.mrf.mxu0
      %v762 = vadd.f32 0.0, %v761
      %v763 = vpop.f32.mrf.mxu0
      %764 = vmatprep.mubr.bf16.mxu0 %v364
      %765 = vmatmul.mubr.bf16.gmra.mxu0 %v363
      %v766 = vpop.f32.mrf.mxu0
      %v767 = vadd.f32 0.0, %v766
      %v768 = vpop.f32.mrf.mxu0
      %v769 = vpop.f32.mrf.mxu0
      %v770 = vadd.f32 0.0, %v769
      %v771 = vpop.f32.mrf.mxu0
      %772 = vmatprep.mubr.bf16.mxu0 %v368
      %773 = vmatmul.mubr.bf16.gmra.mxu0 %v367
      %v774 = vpop.f32.mrf.mxu0
      %v775 = vadd.f32 0.0, %v774
      %v776 = vpop.f32.mrf.mxu0
      %v777 = vpop.f32.mrf.mxu0
      %v778 = vadd.f32 0.0, %v777
      %v779 = vpop.f32.mrf.mxu0
      %780 = vmatprep.mubr.bf16.mxu0 %v372
      %781 = vmatmul.mubr.bf16.gmra.mxu0 %v371
      %v782 = vpop.f32.mrf.mxu0
      %v783 = vadd.f32 0.0, %v782
      %v784 = vpop.f32.mrf.mxu0
      %v785 = vpop.f32.mrf.mxu0
      %v786 = vadd.f32 0.0, %v785
      %v787 = vpop.f32.mrf.mxu0
      %788 = vmatprep.mubr.bf16.mxu0 %v376
      %789 = vmatmul.mubr.bf16.gmra.mxu0 %v375
      %v790 = vpop.f32.mrf.mxu0
      %v791 = vadd.f32 0.0, %v790
      %v792 = vpop.f32.mrf.mxu0
      %v793 = vpop.f32.mrf.mxu0
      %v794 = vadd.f32 0.0, %v793
      %v795 = vpop.f32.mrf.mxu0
      %796 = vmatprep.mubr.bf16.mxu0 %v380
      %797 = vmatmul.mubr.bf16.gmra.mxu0 %v379
      %v798 = vpop.f32.mrf.mxu0
      %v799 = vadd.f32 0.0, %v798
      %v800 = vpop.f32.mrf.mxu0
      %v801 = vpop.f32.mrf.mxu0
      %v802 = vadd.f32 0.0, %v801
      %v803 = vpop.f32.mrf.mxu0
      %804 = vmatprep.mubr.bf16.mxu0 %v384
      %805 = vmatmul.mubr.bf16.gmra.mxu0 %v383
      %v806 = vpop.f32.mrf.mxu0
      %v807 = vadd.f32 0.0, %v806
      %v808 = vpop.f32.mrf.mxu0
      %v809 = vpop.f32.mrf.mxu0
      %v810 = vadd.f32 0.0, %v809
      %v811 = vpop.f32.mrf.mxu0
      %812 = vmatprep.mubr.bf16.mxu0 %v388
      %813 = vmatmul.mubr.bf16.gmra.mxu0 %v387
      %v814 = vpop.f32.mrf.mxu0
      %v815 = vadd.f32 0.0, %v814
      %v816 = vpop.f32.mrf.mxu0
      %v817 = vpop.f32.mrf.mxu0
      %v818 = vadd.f32 0.0, %v817
      %v819 = vpop.f32.mrf.mxu0
      %820 = vmatprep.mubr.bf16.mxu0 %v392
      %821 = vmatmul.mubr.bf16.gmra.mxu0 %v391
      %v822 = vpop.f32.mrf.mxu0
      %v823 = vadd.f32 0.0, %v822
      %v824 = vpop.f32.mrf.mxu0
      %v825 = vpop.f32.mrf.mxu0
      %v826 = vadd.f32 0.0, %v825
      %v827 = vpop.f32.mrf.mxu0
      %828 = vmatprep.mubr.bf16.mxu0 %v396
      %829 = vmatmul.mubr.bf16.gmra.mxu0 %v395
      %v830 = vpop.f32.mrf.mxu0
      %v831 = vadd.f32 0.0, %v830
      %v832 = vpop.f32.mrf.mxu0
      %v833 = vpop.f32.mrf.mxu0
      %v834 = vadd.f32 0.0, %v833
      %v835 = vpop.f32.mrf.mxu0
      %836 = vmatprep.mubr.bf16.mxu0 %v400
      %837 = vmatmul.mubr.bf16.gmra.mxu0 %v399
      %v838 = vpop.f32.mrf.mxu0
      %v839 = vadd.f32 0.0, %v838
      %v840 = vpop.f32.mrf.mxu0
      %v841 = vpop.f32.mrf.mxu0
      %v842 = vadd.f32 0.0, %v841
      %v843 = vpop.f32.mrf.mxu0
      %844 = vmatprep.mubr.bf16.mxu0 %v404
      %845 = vmatmul.mubr.bf16.gmra.mxu0 %v403
      %v846 = vpop.f32.mrf.mxu0
      %v847 = vadd.f32 0.0, %v846
      %v848 = vpop.f32.mrf.mxu0
      %v849 = vpop.f32.mrf.mxu0
      %v850 = vadd.f32 0.0, %v849
      %v851 = vpop.f32.mrf.mxu0
      %852 = vmatprep.mubr.bf16.mxu0 %v408
      %853 = vmatmul.mubr.bf16.gmra.mxu0 %v407
      %v854 = vpop.f32.mrf.mxu0
      %v855 = vadd.f32 0.0, %v854
      %v856 = vpop.f32.mrf.mxu0
      %v857 = vpop.f32.mrf.mxu0
      %v858 = vadd.f32 0.0, %v857
      %v859 = vpop.f32.mrf.mxu0
      %860 = vmatprep.mubr.bf16.mxu0 %v412
      %861 = vmatmul.mubr.bf16.gmra.mxu0 %v411
      %v862 = vpop.f32.mrf.mxu0
      %v863 = vadd.f32 0.0, %v862
      %v864 = vpop.f32.mrf.mxu0
      %v865 = vpop.f32.mrf.mxu0
      %v866 = vadd.f32 0.0, %v865
      %v867 = vpop.f32.mrf.mxu0
      %868 = vdwg.mxu0
      %869 = vmatprep.subr.bf16.mxu0 0
      %870 = vmatpush1.bf16.msra.mxu0 %v667
      %871 = vmatprep.subr.bf16.mxu0 0
      %872 = vmatpush1.bf16.msra.mxu0 %v666
      %873 = vmatprep.subr.bf16.mxu0 0
      %874 = vmatpush1.bf16.msra.mxu0 %v665
      %875 = vmatprep.subr.bf16.mxu0 0
      %876 = vmatpush1.bf16.msra.mxu0 %v664
      %877 = vmatprep.subr.bf16.mxu0 0
      %878 = vmatpush1.bf16.msra.mxu0 %v663
      %879 = vmatprep.subr.bf16.mxu0 0
      %880 = vmatpush1.bf16.msra.mxu0 %v662
      %881 = vmatprep.subr.bf16.mxu0 0
      %882 = vmatpush1.bf16.msra.mxu0 %v661
      %883 = vmatprep.subr.bf16.mxu0 0
      %884 = vmatpush1.bf16.msra.mxu0 %v660
      %885 = vmatprep.subr.bf16.mxu0 0
      %886 = vmatpush2.bf16.msra.mxu0 %v675
      %887 = vmatprep.subr.bf16.mxu0 0
      %888 = vmatpush2.bf16.msra.mxu0 %v674
      %889 = vmatprep.subr.bf16.mxu0 0
      %890 = vmatpush2.bf16.msra.mxu0 %v673
      %891 = vmatprep.subr.bf16.mxu0 0
      %892 = vmatpush2.bf16.msra.mxu0 %v672
      %893 = vmatprep.subr.bf16.mxu0 0
      %894 = vmatpush2.bf16.msra.mxu0 %v671
      %895 = vmatprep.subr.bf16.mxu0 0
      %896 = vmatpush2.bf16.msra.mxu0 %v670
      %897 = vmatprep.subr.bf16.mxu0 0
      %898 = vmatpush2.bf16.msra.mxu0 %v669
      %899 = vmatprep.subr.bf16.mxu0 0
      %900 = vmatpush2.bf16.msra.mxu0 %v668
      %901 = vmatprep.mubr.bf16.mxu0 %v354
      %902 = vmatmul.mubr.bf16.gmra.mxu0 %v353
      %v903 = vpop.f32.mrf.mxu0
      %v904 = vadd.f32 %v743, %v903
      %v905 = vpop.f32.mrf.mxu0
      %v906 = vpop.f32.mrf.mxu0
      %v907 = vadd.f32 %v746, %v906
      %v908 = vpop.f32.mrf.mxu0
      %909 = vmatprep.mubr.bf16.mxu0 %v358
      %910 = vmatmul.mubr.bf16.gmra.mxu0 %v357
      %v911 = vpop.f32.mrf.mxu0
      %v912 = vadd.f32 %v751, %v911
      %v913 = vpop.f32.mrf.mxu0
      %v914 = vpop.f32.mrf.mxu0
      %v915 = vadd.f32 %v754, %v914
      %v916 = vpop.f32.mrf.mxu0
      %917 = vmatprep.mubr.bf16.mxu0 %v362
      %918 = vmatmul.mubr.bf16.gmra.mxu0 %v361
      %v919 = vpop.f32.mrf.mxu0
      %v920 = vadd.f32 %v759, %v919
      %v921 = vpop.f32.mrf.mxu0
      %v922 = vpop.f32.mrf.mxu0
      %v923 = vadd.f32 %v762, %v922
      %v924 = vpop.f32.mrf.mxu0
      %925 = vmatprep.mubr.bf16.mxu0 %v366
      %926 = vmatmul.mubr.bf16.gmra.mxu0 %v365
      %v927 = vpop.f32.mrf.mxu0
      %v928 = vadd.f32 %v767, %v927
      %v929 = vpop.f32.mrf.mxu0
      %v930 = vpop.f32.mrf.mxu0
      %v931 = vadd.f32 %v770, %v930
      %v932 = vpop.f32.mrf.mxu0
      %933 = vmatprep.mubr.bf16.mxu0 %v370
      %934 = vmatmul.mubr.bf16.gmra.mxu0 %v369
      %v935 = vpop.f32.mrf.mxu0
      %v936 = vadd.f32 %v775, %v935
      %v937 = vpop.f32.mrf.mxu0
      %v938 = vpop.f32.mrf.mxu0
      %v939 = vadd.f32 %v778, %v938
      %v940 = vpop.f32.mrf.mxu0
      %941 = vmatprep.mubr.bf16.mxu0 %v374
      %942 = vmatmul.mubr.bf16.gmra.mxu0 %v373
      %v943 = vpop.f32.mrf.mxu0
      %v944 = vadd.f32 %v783, %v943
      %v945 = vpop.f32.mrf.mxu0
      %v946 = vpop.f32.mrf.mxu0
      %v947 = vadd.f32 %v786, %v946
      %v948 = vpop.f32.mrf.mxu0
      %949 = vmatprep.mubr.bf16.mxu0 %v378
      %950 = vmatmul.mubr.bf16.gmra.mxu0 %v377
      %v951 = vpop.f32.mrf.mxu0
      %v952 = vadd.f32 %v791, %v951
      %v953 = vpop.f32.mrf.mxu0
      %v954 = vpop.f32.mrf.mxu0
      %v955 = vadd.f32 %v794, %v954
      %v956 = vpop.f32.mrf.mxu0
      %957 = vmatprep.mubr.bf16.mxu0 %v382
      %958 = vmatmul.mubr.bf16.gmra.mxu0 %v381
      %v959 = vpop.f32.mrf.mxu0
      %v960 = vadd.f32 %v799, %v959
      %v961 = vpop.f32.mrf.mxu0
      %v962 = vpop.f32.mrf.mxu0
      %v963 = vadd.f32 %v802, %v962
      %v964 = vpop.f32.mrf.mxu0
      %965 = vmatprep.mubr.bf16.mxu0 %v386
      %966 = vmatmul.mubr.bf16.gmra.mxu0 %v385
      %v967 = vpop.f32.mrf.mxu0
      %v968 = vadd.f32 %v807, %v967
      %v969 = vpop.f32.mrf.mxu0
      %v970 = vpop.f32.mrf.mxu0
      %v971 = vadd.f32 %v810, %v970
      %v972 = vpop.f32.mrf.mxu0
      %973 = vmatprep.mubr.bf16.mxu0 %v390
      %974 = vmatmul.mubr.bf16.gmra.mxu0 %v389
      %v975 = vpop.f32.mrf.mxu0
      %v976 = vadd.f32 %v815, %v975
      %v977 = vpop.f32.mrf.mxu0
      %v978 = vpop.f32.mrf.mxu0
      %v979 = vadd.f32 %v818, %v978
      %v980 = vpop.f32.mrf.mxu0
      %981 = vmatprep.mubr.bf16.mxu0 %v394
      %982 = vmatmul.mubr.bf16.gmra.mxu0 %v393
      %v983 = vpop.f32.mrf.mxu0
      %v984 = vadd.f32 %v823, %v983
      %v985 = vpop.f32.mrf.mxu0
      %v986 = vpop.f32.mrf.mxu0
      %v987 = vadd.f32 %v826, %v986
      %v988 = vpop.f32.mrf.mxu0
      %989 = vmatprep.mubr.bf16.mxu0 %v398
      %990 = vmatmul.mubr.bf16.gmra.mxu0 %v397
      %v991 = vpop.f32.mrf.mxu0
      %v992 = vadd.f32 %v831, %v991
      %v993 = vpop.f32.mrf.mxu0
      %v994 = vpop.f32.mrf.mxu0
      %v995 = vadd.f32 %v834, %v994
      %v996 = vpop.f32.mrf.mxu0
      %997 = vmatprep.mubr.bf16.mxu0 %v402
      %998 = vmatmul.mubr.bf16.gmra.mxu0 %v401
      %v999 = vpop.f32.mrf.mxu0
      %v1000 = vadd.f32 %v839, %v999
      %v1001 = vpop.f32.mrf.mxu0
      %v1002 = vpop.f32.mrf.mxu0
      %v1003 = vadd.f32 %v842, %v1002
      %v1004 = vpop.f32.mrf.mxu0
      %1005 = vmatprep.mubr.bf16.mxu0 %v406
      %1006 = vmatmul.mubr.bf16.gmra.mxu0 %v405
      %v1007 = vpop.f32.mrf.mxu0
      %v1008 = vadd.f32 %v847, %v1007
      %v1009 = vpop.f32.mrf.mxu0
      %v1010 = vpop.f32.mrf.mxu0
      %v1011 = vadd.f32 %v850, %v1010
      %v1012 = vpop.f32.mrf.mxu0
      %1013 = vmatprep.mubr.bf16.mxu0 %v410
      %1014 = vmatmul.mubr.bf16.gmra.mxu0 %v409
      %v1015 = vpop.f32.mrf.mxu0
      %v1016 = vadd.f32 %v855, %v1015
      %v1017 = vpop.f32.mrf.mxu0
      %v1018 = vpop.f32.mrf.mxu0
      %v1019 = vadd.f32 %v858, %v1018
      %v1020 = vpop.f32.mrf.mxu0
      %1021 = vmatprep.mubr.bf16.mxu0 %v414
      %1022 = vmatmul.mubr.bf16.gmra.mxu0 %v413
      %v1023 = vpop.f32.mrf.mxu0
      %v1024 = vadd.f32 %v863, %v1023
      %v1025 = vpop.f32.mrf.mxu0
      %v1026 = vpop.f32.mrf.mxu0
      %v1027 = vadd.f32 %v866, %v1026
      %v1028 = vpop.f32.mrf.mxu0
      %1029 = vdwg.mxu0
      %v1030 = vadd.f32 %v484, %v904
      %v1031 = vadd.f32 %v485, %v907
      %v1032 = vadd.f32 %v486, %v912
      %v1033 = vadd.f32 %v487, %v915
      %v1034 = vadd.f32 %v488, %v920
      %v1035 = vadd.f32 %v489, %v923
      %v1036 = vadd.f32 %v490, %v928
      %v1037 = vadd.f32 %v491, %v931
      %v1038 = vadd.f32 %v492, %v936
      %v1039 = vadd.f32 %v493, %v939
      %v1040 = vadd.f32 %v494, %v944
      %v1041 = vadd.f32 %v495, %v947
      %v1042 = vadd.f32 %v496, %v952
      %v1043 = vadd.f32 %v497, %v955
      %v1044 = vadd.f32 %v498, %v960
      %v1045 = vadd.f32 %v499, %v963
      %v1046 = vadd.f32 %v500, %v968
      %v1047 = vadd.f32 %v501, %v971
      %v1048 = vadd.f32 %v502, %v976
      %v1049 = vadd.f32 %v503, %v979
      %v1050 = vadd.f32 %v504, %v984
      %v1051 = vadd.f32 %v505, %v987
      %v1052 = vadd.f32 %v506, %v992
      %v1053 = vadd.f32 %v507, %v995
      %v1054 = vadd.f32 %v508, %v1000
      %v1055 = vadd.f32 %v509, %v1003
      %v1056 = vadd.f32 %v510, %v1008
      %v1057 = vadd.f32 %v511, %v1011
      %v1058 = vadd.f32 %v512, %v1016
      %v1059 = vadd.f32 %v513, %v1019
      %v1060 = vadd.f32 %v514, %v1024
      %v1061 = vadd.f32 %v515, %v1027
      %1062 = vst [vmem:[%s280] sm:$0xff] %v1030
      %1063 = vst [vmem:[%s280 + $0x8] sm:$0xff] %v1031
      %1064 = vst [vmem:[%s280 + $0x10] sm:$0xff] %v1032
      %1065 = vst [vmem:[%s280 + $0x18] sm:$0xff] %v1033
      %1066 = vst [vmem:[%s280 + $0x20] sm:$0xff] %v1034
      %1067 = vst [vmem:[%s280 + $0x28] sm:$0xff] %v1035
      %1068 = vst [vmem:[%s280 + $0x30] sm:$0xff] %v1036
      %1069 = vst [vmem:[%s280 + $0x38] sm:$0xff] %v1037
      %1070 = vst [vmem:[%s280 + $0x40] sm:$0xff] %v1038
      %1071 = vst [vmem:[%s280 + $0x48] sm:$0xff] %v1039
      %1072 = vst [vmem:[%s280 + $0x50] sm:$0xff] %v1040
      %1073 = vst [vmem:[%s280 + $0x58] sm:$0xff] %v1041
      %1074 = vst [vmem:[%s280 + $0x60] sm:$0xff] %v1042
      %1075 = vst [vmem:[%s280 + $0x68] sm:$0xff] %v1043
      %1076 = vst [vmem:[%s280 + $0x70] sm:$0xff] %v1044
      %1077 = vst [vmem:[%s280 + $0x78] sm:$0xff] %v1045
      %1078 = vst [vmem:[%s280 + $0x80] sm:$0xff] %v1046
      %1079 = vst [vmem:[%s280 + $0x88] sm:$0xff] %v1047
      %1080 = vst [vmem:[%s280 + $0x90] sm:$0xff] %v1048
      %1081 = vst [vmem:[%s280 + $0x98] sm:$0xff] %v1049
      %1082 = vst [vmem:[%s280 + $0xa0] sm:$0xff] %v1050
      %1083 = vst [vmem:[%s280 + $0xa8] sm:$0xff] %v1051
      %1084 = vst [vmem:[%s280 + $0xb0] sm:$0xff] %v1052
      %1085 = vst [vmem:[%s280 + $0xb8] sm:$0xff] %v1053
      %1086 = vst [vmem:[%s280 + $0xc0] sm:$0xff] %v1054
      %1087 = vst [vmem:[%s280 + $0xc8] sm:$0xff] %v1055
      %1088 = vst [vmem:[%s280 + $0xd0] sm:$0xff] %v1056
      %1089 = vst [vmem:[%s280 + $0xd8] sm:$0xff] %v1057
      %1090 = vst [vmem:[%s280 + $0xe0] sm:$0xff] %v1058
      %1091 = vst [vmem:[%s280 + $0xe8] sm:$0xff] %v1059
      %1092 = vst [vmem:[%s280 + $0xf0] sm:$0xff] %v1060
      %1093 = vst [vmem:[%s280 + $0xf8] sm:$0xff] %v1061
      // Predicated region
      $region45: #{gcn_forward.3} parent=39 // pred_check
        %p1094 = pneg %p283
      $region46: #{gcn_forward.3} parent=39 // pred_check_branch
        %1096 = sbr.rel (%p1094) target = $region48
      $region47: #{gcn_forward.3} parent=39 // pred_region
        %s1097 = smul.u32 %s21, 256
        %s1098 = sshra.s32 %s1097, 3
        %s1099 = sand.u32 %s1097, 7
        %s1100 = smul.addr %s1098, 4
        %s1101 = scalar_lea.vmem %s1, %s1100
        %v1102 = vld [vmem:[%s1101] sm:$0xf]
        %v1103 = vld [vmem:[%s1101 + $0x4] sm:$0xf]
        %v1104 = vld [vmem:[%s1101 + $0x8] sm:$0xf]
        %v1105 = vld [vmem:[%s1101 + $0xc] sm:$0xf]
        %v1106 = vld [vmem:[%s1101 + $0x10] sm:$0xf]
        %v1107 = vld [vmem:[%s1101 + $0x14] sm:$0xf]
        %v1108 = vld [vmem:[%s1101 + $0x18] sm:$0xf]
        %v1109 = vld [vmem:[%s1101 + $0x1c] sm:$0xf]
        %v1110 = vld [vmem:[%s1101 + $0x20] sm:$0xf]
        %v1111 = vld [vmem:[%s1101 + $0x24] sm:$0xf]
        %v1112 = vld [vmem:[%s1101 + $0x28] sm:$0xf]
        %v1113 = vld [vmem:[%s1101 + $0x2c] sm:$0xf]
        %v1114 = vld [vmem:[%s1101 + $0x30] sm:$0xf]
        %v1115 = vld [vmem:[%s1101 + $0x34] sm:$0xf]
        %v1116 = vld [vmem:[%s1101 + $0x38] sm:$0xf]
        %v1117 = vld [vmem:[%s1101 + $0x3c] sm:$0xf]
        %v1118 = vld [vmem:[%s1101 + $0x40] sm:$0xf]
        %v1119 = vld [vmem:[%s1101 + $0x44] sm:$0xf]
        %v1120 = vld [vmem:[%s1101 + $0x48] sm:$0xf]
        %v1121 = vld [vmem:[%s1101 + $0x4c] sm:$0xf]
        %v1122 = vld [vmem:[%s1101 + $0x50] sm:$0xf]
        %v1123 = vld [vmem:[%s1101 + $0x54] sm:$0xf]
        %v1124 = vld [vmem:[%s1101 + $0x58] sm:$0xf]
        %v1125 = vld [vmem:[%s1101 + $0x5c] sm:$0xf]
        %v1126 = vld [vmem:[%s1101 + $0x60] sm:$0xf]
        %v1127 = vld [vmem:[%s1101 + $0x64] sm:$0xf]
        %v1128 = vld [vmem:[%s1101 + $0x68] sm:$0xf]
        %v1129 = vld [vmem:[%s1101 + $0x6c] sm:$0xf]
        %v1130 = vld [vmem:[%s1101 + $0x70] sm:$0xf]
        %v1131 = vld [vmem:[%s1101 + $0x74] sm:$0xf]
        %v1132 = vld [vmem:[%s1101 + $0x78] sm:$0xf]
        %v1133 = vld [vmem:[%s1101 + $0x7c] sm:$0xf]
        %v1134 = vunpack.c.l.bf16 %v1102
        %v1135 = vunpack.c.l.bf16 %v1103
        %v1136 = vunpack.c.l.bf16 %v1104
        %v1137 = vunpack.c.l.bf16 %v1105
        %v1138 = vunpack.c.l.bf16 %v1106
        %v1139 = vunpack.c.l.bf16 %v1107
        %v1140 = vunpack.c.l.bf16 %v1108
        %v1141 = vunpack.c.l.bf16 %v1109
        %v1142 = vunpack.c.l.bf16 %v1110
        %v1143 = vunpack.c.l.bf16 %v1111
        %v1144 = vunpack.c.l.bf16 %v1112
        %v1145 = vunpack.c.l.bf16 %v1113
        %v1146 = vunpack.c.l.bf16 %v1114
        %v1147 = vunpack.c.l.bf16 %v1115
        %v1148 = vunpack.c.l.bf16 %v1116
        %v1149 = vunpack.c.l.bf16 %v1117
        %v1150 = vunpack.c.l.bf16 %v1118
        %v1151 = vunpack.c.l.bf16 %v1119
        %v1152 = vunpack.c.l.bf16 %v1120
        %v1153 = vunpack.c.l.bf16 %v1121
        %v1154 = vunpack.c.l.bf16 %v1122
        %v1155 = vunpack.c.l.bf16 %v1123
        %v1156 = vunpack.c.l.bf16 %v1124
        %v1157 = vunpack.c.l.bf16 %v1125
        %v1158 = vunpack.c.l.bf16 %v1126
        %v1159 = vunpack.c.l.bf16 %v1127
        %v1160 = vunpack.c.l.bf16 %v1128
        %v1161 = vunpack.c.l.bf16 %v1129
        %v1162 = vunpack.c.l.bf16 %v1130
        %v1163 = vunpack.c.l.bf16 %v1131
        %v1164 = vunpack.c.l.bf16 %v1132
        %v1165 = vunpack.c.l.bf16 %v1133
        %v1166 = vld [vmem:[%s274] sm:$0xff]
        %v1167 = vld [vmem:[%s274 + $0x8] sm:$0xff]
        %v1168 = vld [vmem:[%s274 + $0x10] sm:$0xff]
        %v1169 = vld [vmem:[%s274 + $0x18] sm:$0xff]
        %v1170 = vld [vmem:[%s274 + $0x20] sm:$0xff]
        %v1171 = vld [vmem:[%s274 + $0x28] sm:$0xff]
        %v1172 = vld [vmem:[%s274 + $0x30] sm:$0xff]
        %v1173 = vld [vmem:[%s274 + $0x38] sm:$0xff]
        %v1174 = vld [vmem:[%s274 + $0x40] sm:$0xff]
        %v1175 = vld [vmem:[%s274 + $0x48] sm:$0xff]
        %v1176 = vld [vmem:[%s274 + $0x50] sm:$0xff]
        %v1177 = vld [vmem:[%s274 + $0x58] sm:$0xff]
        %v1178 = vld [vmem:[%s274 + $0x60] sm:$0xff]
        %v1179 = vld [vmem:[%s274 + $0x68] sm:$0xff]
        %v1180 = vld [vmem:[%s274 + $0x70] sm:$0xff]
        %v1181 = vld [vmem:[%s274 + $0x78] sm:$0xff]
        %v1182 = vld [vmem:[%s274 + $0x80] sm:$0xff]
        %v1183 = vld [vmem:[%s274 + $0x88] sm:$0xff]
        %v1184 = vld [vmem:[%s274 + $0x90] sm:$0xff]
        %v1185 = vld [vmem:[%s274 + $0x98] sm:$0xff]
        %v1186 = vld [vmem:[%s274 + $0xa0] sm:$0xff]
        %v1187 = vld [vmem:[%s274 + $0xa8] sm:$0xff]
        %v1188 = vld [vmem:[%s274 + $0xb0] sm:$0xff]
        %v1189 = vld [vmem:[%s274 + $0xb8] sm:$0xff]
        %v1190 = vld [vmem:[%s274 + $0xc0] sm:$0xff]
        %v1191 = vld [vmem:[%s274 + $0xc8] sm:$0xff]
        %v1192 = vld [vmem:[%s274 + $0xd0] sm:$0xff]
        %v1193 = vld [vmem:[%s274 + $0xd8] sm:$0xff]
        %v1194 = vld [vmem:[%s274 + $0xe0] sm:$0xff]
        %v1195 = vld [vmem:[%s274 + $0xe8] sm:$0xff]
        %v1196 = vld [vmem:[%s274 + $0xf0] sm:$0xff]
        %v1197 = vld [vmem:[%s274 + $0xf8] sm:$0xff]
        %v1198 = vld [vmem:[%s280] sm:$0xff]
        %v1199 = vld [vmem:[%s280 + $0x8] sm:$0xff]
        %v1200 = vld [vmem:[%s280 + $0x10] sm:$0xff]
        %v1201 = vld [vmem:[%s280 + $0x18] sm:$0xff]
        %v1202 = vld [vmem:[%s280 + $0x20] sm:$0xff]
        %v1203 = vld [vmem:[%s280 + $0x28] sm:$0xff]
        %v1204 = vld [vmem:[%s280 + $0x30] sm:$0xff]
        %v1205 = vld [vmem:[%s280 + $0x38] sm:$0xff]
        %v1206 = vld [vmem:[%s280 + $0x40] sm:$0xff]
        %v1207 = vld [vmem:[%s280 + $0x48] sm:$0xff]
        %v1208 = vld [vmem:[%s280 + $0x50] sm:$0xff]
        %v1209 = vld [vmem:[%s280 + $0x58] sm:$0xff]
        %v1210 = vld [vmem:[%s280 + $0x60] sm:$0xff]
        %v1211 = vld [vmem:[%s280 + $0x68] sm:$0xff]
        %v1212 = vld [vmem:[%s280 + $0x70] sm:$0xff]
        %v1213 = vld [vmem:[%s280 + $0x78] sm:$0xff]
        %v1214 = vld [vmem:[%s280 + $0x80] sm:$0xff]
        %v1215 = vld [vmem:[%s280 + $0x88] sm:$0xff]
        %v1216 = vld [vmem:[%s280 + $0x90] sm:$0xff]
        %v1217 = vld [vmem:[%s280 + $0x98] sm:$0xff]
        %v1218 = vld [vmem:[%s280 + $0xa0] sm:$0xff]
        %v1219 = vld [vmem:[%s280 + $0xa8] sm:$0xff]
        %v1220 = vld [vmem:[%s280 + $0xb0] sm:$0xff]
        %v1221 = vld [vmem:[%s280 + $0xb8] sm:$0xff]
        %v1222 = vld [vmem:[%s280 + $0xc0] sm:$0xff]
        %v1223 = vld [vmem:[%s280 + $0xc8] sm:$0xff]
        %v1224 = vld [vmem:[%s280 + $0xd0] sm:$0xff]
        %v1225 = vld [vmem:[%s280 + $0xd8] sm:$0xff]
        %v1226 = vld [vmem:[%s280 + $0xe0] sm:$0xff]
        %v1227 = vld [vmem:[%s280 + $0xe8] sm:$0xff]
        %v1228 = vld [vmem:[%s280 + $0xf0] sm:$0xff]
        %v1229 = vld [vmem:[%s280 + $0xf8] sm:$0xff]
        %v1230 = vadd.f32 %v1198, %v1134
        %v1231 = vadd.f32 %v1199, %v1135
        %v1232 = vadd.f32 %v1200, %v1136
        %v1233 = vadd.f32 %v1201, %v1137
        %v1234 = vadd.f32 %v1202, %v1138
        %v1235 = vadd.f32 %v1203, %v1139
        %v1236 = vadd.f32 %v1204, %v1140
        %v1237 = vadd.f32 %v1205, %v1141
        %v1238 = vadd.f32 %v1206, %v1142
        %v1239 = vadd.f32 %v1207, %v1143
        %v1240 = vadd.f32 %v1208, %v1144
        %v1241 = vadd.f32 %v1209, %v1145
        %v1242 = vadd.f32 %v1210, %v1146
        %v1243 = vadd.f32 %v1211, %v1147
        %v1244 = vadd.f32 %v1212, %v1148
        %v1245 = vadd.f32 %v1213, %v1149
        %v1246 = vadd.f32 %v1214, %v1150
        %v1247 = vadd.f32 %v1215, %v1151
        %v1248 = vadd.f32 %v1216, %v1152
        %v1249 = vadd.f32 %v1217, %v1153
        %v1250 = vadd.f32 %v1218, %v1154
        %v1251 = vadd.f32 %v1219, %v1155
        %v1252 = vadd.f32 %v1220, %v1156
        %v1253 = vadd.f32 %v1221, %v1157
        %v1254 = vadd.f32 %v1222, %v1158
        %v1255 = vadd.f32 %v1223, %v1159
        %v1256 = vadd.f32 %v1224, %v1160
        %v1257 = vadd.f32 %v1225, %v1161
        %v1258 = vadd.f32 %v1226, %v1162
        %v1259 = vadd.f32 %v1227, %v1163
        %v1260 = vadd.f32 %v1228, %v1164
        %v1261 = vadd.f32 %v1229, %v1165
        %1263 = vset.pattern.permute.xlu0 0
        %1264 = vperm.xlu0 %1263, %v1166
        %v1265 = vpop.permute.xlu0 %1264
        %1268 = vset.pattern.permute.xlu0 0
        %1269 = vperm.xlu0 %1268, %v1167
        %v1270 = vpop.permute.xlu0 %1269
        %1273 = vset.pattern.permute.xlu0 0
        %1274 = vperm.xlu0 %1273, %v1168
        %v1275 = vpop.permute.xlu0 %1274
        %1278 = vset.pattern.permute.xlu0 0
        %1279 = vperm.xlu0 %1278, %v1169
        %v1280 = vpop.permute.xlu0 %1279
        %1283 = vset.pattern.permute.xlu0 0
        %1284 = vperm.xlu0 %1283, %v1170
        %v1285 = vpop.permute.xlu0 %1284
        %1288 = vset.pattern.permute.xlu0 0
        %1289 = vperm.xlu0 %1288, %v1171
        %v1290 = vpop.permute.xlu0 %1289
        %1293 = vset.pattern.permute.xlu0 0
        %1294 = vperm.xlu0 %1293, %v1172
        %v1295 = vpop.permute.xlu0 %1294
        %1298 = vset.pattern.permute.xlu0 0
        %1299 = vperm.xlu0 %1298, %v1173
        %v1300 = vpop.permute.xlu0 %1299
        %1303 = vset.pattern.permute.xlu0 0
        %1304 = vperm.xlu0 %1303, %v1174
        %v1305 = vpop.permute.xlu0 %1304
        %1308 = vset.pattern.permute.xlu0 0
        %1309 = vperm.xlu0 %1308, %v1175
        %v1310 = vpop.permute.xlu0 %1309
        %1313 = vset.pattern.permute.xlu0 0
        %1314 = vperm.xlu0 %1313, %v1176
        %v1315 = vpop.permute.xlu0 %1314
        %1318 = vset.pattern.permute.xlu0 0
        %1319 = vperm.xlu0 %1318, %v1177
        %v1320 = vpop.permute.xlu0 %1319
        %1323 = vset.pattern.permute.xlu0 0
        %1324 = vperm.xlu0 %1323, %v1178
        %v1325 = vpop.permute.xlu0 %1324
        %1328 = vset.pattern.permute.xlu0 0
        %1329 = vperm.xlu0 %1328, %v1179
        %v1330 = vpop.permute.xlu0 %1329
        %1333 = vset.pattern.permute.xlu0 0
        %1334 = vperm.xlu0 %1333, %v1180
        %v1335 = vpop.permute.xlu0 %1334
        %1338 = vset.pattern.permute.xlu0 0
        %1339 = vperm.xlu0 %1338, %v1181
        %v1340 = vpop.permute.xlu0 %1339
        %1343 = vset.pattern.permute.xlu0 0
        %1344 = vperm.xlu0 %1343, %v1182
        %v1345 = vpop.permute.xlu0 %1344
        %1348 = vset.pattern.permute.xlu0 0
        %1349 = vperm.xlu0 %1348, %v1183
        %v1350 = vpop.permute.xlu0 %1349
        %1353 = vset.pattern.permute.xlu0 0
        %1354 = vperm.xlu0 %1353, %v1184
        %v1355 = vpop.permute.xlu0 %1354
        %1358 = vset.pattern.permute.xlu0 0
        %1359 = vperm.xlu0 %1358, %v1185
        %v1360 = vpop.permute.xlu0 %1359
        %1363 = vset.pattern.permute.xlu0 0
        %1364 = vperm.xlu0 %1363, %v1186
        %v1365 = vpop.permute.xlu0 %1364
        %1368 = vset.pattern.permute.xlu0 0
        %1369 = vperm.xlu0 %1368, %v1187
        %v1370 = vpop.permute.xlu0 %1369
        %1373 = vset.pattern.permute.xlu0 0
        %1374 = vperm.xlu0 %1373, %v1188
        %v1375 = vpop.permute.xlu0 %1374
        %1378 = vset.pattern.permute.xlu0 0
        %1379 = vperm.xlu0 %1378, %v1189
        %v1380 = vpop.permute.xlu0 %1379
        %1383 = vset.pattern.permute.xlu0 0
        %1384 = vperm.xlu0 %1383, %v1190
        %v1385 = vpop.permute.xlu0 %1384
        %1388 = vset.pattern.permute.xlu0 0
        %1389 = vperm.xlu0 %1388, %v1191
        %v1390 = vpop.permute.xlu0 %1389
        %1393 = vset.pattern.permute.xlu0 0
        %1394 = vperm.xlu0 %1393, %v1192
        %v1395 = vpop.permute.xlu0 %1394
        %1398 = vset.pattern.permute.xlu0 0
        %1399 = vperm.xlu0 %1398, %v1193
        %v1400 = vpop.permute.xlu0 %1399
        %1403 = vset.pattern.permute.xlu0 0
        %1404 = vperm.xlu0 %1403, %v1194
        %v1405 = vpop.permute.xlu0 %1404
        %1408 = vset.pattern.permute.xlu0 0
        %1409 = vperm.xlu0 %1408, %v1195
        %v1410 = vpop.permute.xlu0 %1409
        %1413 = vset.pattern.permute.xlu0 0
        %1414 = vperm.xlu0 %1413, %v1196
        %v1415 = vpop.permute.xlu0 %1414
        %1418 = vset.pattern.permute.xlu0 0
        %1419 = vperm.xlu0 %1418, %v1197
        %v1420 = vpop.permute.xlu0 %1419
        %v1422 = vmul.f32 %v1265, %v1230
        %v1423 = vmul.f32 %v1270, %v1231
        %v1424 = vmul.f32 %v1275, %v1232
        %v1425 = vmul.f32 %v1280, %v1233
        %v1426 = vmul.f32 %v1285, %v1234
        %v1427 = vmul.f32 %v1290, %v1235
        %v1428 = vmul.f32 %v1295, %v1236
        %v1429 = vmul.f32 %v1300, %v1237
        %v1430 = vmul.f32 %v1305, %v1238
        %v1431 = vmul.f32 %v1310, %v1239
        %v1432 = vmul.f32 %v1315, %v1240
        %v1433 = vmul.f32 %v1320, %v1241
        %v1434 = vmul.f32 %v1325, %v1242
        %v1435 = vmul.f32 %v1330, %v1243
        %v1436 = vmul.f32 %v1335, %v1244
        %v1437 = vmul.f32 %v1340, %v1245
        %v1438 = vmul.f32 %v1345, %v1246
        %v1439 = vmul.f32 %v1350, %v1247
        %v1440 = vmul.f32 %v1355, %v1248
        %v1441 = vmul.f32 %v1360, %v1249
        %v1442 = vmul.f32 %v1365, %v1250
        %v1443 = vmul.f32 %v1370, %v1251
        %v1444 = vmul.f32 %v1375, %v1252
        %v1445 = vmul.f32 %v1380, %v1253
        %v1446 = vmul.f32 %v1385, %v1254
        %v1447 = vmul.f32 %v1390, %v1255
        %v1448 = vmul.f32 %v1395, %v1256
        %v1449 = vmul.f32 %v1400, %v1257
        %v1450 = vmul.f32 %v1405, %v1258
        %v1451 = vmul.f32 %v1410, %v1259
        %v1452 = vmul.f32 %v1415, %v1260
        %v1453 = vmul.f32 %v1420, %v1261
        %v1454 = vld [vmem:[%s3] sm:$0x1]
        %v1456 = vlaneseq
        %v1457 = vshrl.u32 %v1456, 7
        %v1458 = vsub.s32 0, %v1457
        %v1459 = vrot.slane %v1454, %v1458
        %v1461 = vadd.f32 %v1422, %v1459
        %v1462 = vadd.f32 %v1423, %v1459
        %v1463 = vadd.f32 %v1424, %v1459
        %v1464 = vadd.f32 %v1425, %v1459
        %v1465 = vadd.f32 %v1426, %v1459
        %v1466 = vadd.f32 %v1427, %v1459
        %v1467 = vadd.f32 %v1428, %v1459
        %v1468 = vadd.f32 %v1429, %v1459
        %v1469 = vadd.f32 %v1430, %v1459
        %v1470 = vadd.f32 %v1431, %v1459
        %v1471 = vadd.f32 %v1432, %v1459
        %v1472 = vadd.f32 %v1433, %v1459
        %v1473 = vadd.f32 %v1434, %v1459
        %v1474 = vadd.f32 %v1435, %v1459
        %v1475 = vadd.f32 %v1436, %v1459
        %v1476 = vadd.f32 %v1437, %v1459
        %v1477 = vadd.f32 %v1438, %v1459
        %v1478 = vadd.f32 %v1439, %v1459
        %v1479 = vadd.f32 %v1440, %v1459
        %v1480 = vadd.f32 %v1441, %v1459
        %v1481 = vadd.f32 %v1442, %v1459
        %v1482 = vadd.f32 %v1443, %v1459
        %v1483 = vadd.f32 %v1444, %v1459
        %v1484 = vadd.f32 %v1445, %v1459
        %v1485 = vadd.f32 %v1446, %v1459
        %v1486 = vadd.f32 %v1447, %v1459
        %v1487 = vadd.f32 %v1448, %v1459
        %v1488 = vadd.f32 %v1449, %v1459
        %v1489 = vadd.f32 %v1450, %v1459
        %v1490 = vadd.f32 %v1451, %v1459
        %v1491 = vadd.f32 %v1452, %v1459
        %v1492 = vadd.f32 %v1453, %v1459
        %s1493 = sld [smem:[#allocation2]]
        %vm1494 = vcmp.gt.f32.partialorder %v1461, 0.0
        %vm1495 = vcmp.gt.f32.partialorder %v1462, 0.0
        %vm1496 = vcmp.gt.f32.partialorder %v1463, 0.0
        %vm1497 = vcmp.gt.f32.partialorder %v1464, 0.0
        %vm1498 = vcmp.gt.f32.partialorder %v1465, 0.0
        %vm1499 = vcmp.gt.f32.partialorder %v1466, 0.0
        %vm1500 = vcmp.gt.f32.partialorder %v1467, 0.0
        %vm1501 = vcmp.gt.f32.partialorder %v1468, 0.0
        %vm1502 = vcmp.gt.f32.partialorder %v1469, 0.0
        %vm1503 = vcmp.gt.f32.partialorder %v1470, 0.0
        %vm1504 = vcmp.gt.f32.partialorder %v1471, 0.0
        %vm1505 = vcmp.gt.f32.partialorder %v1472, 0.0
        %vm1506 = vcmp.gt.f32.partialorder %v1473, 0.0
        %vm1507 = vcmp.gt.f32.partialorder %v1474, 0.0
        %vm1508 = vcmp.gt.f32.partialorder %v1475, 0.0
        %vm1509 = vcmp.gt.f32.partialorder %v1476, 0.0
        %vm1510 = vcmp.gt.f32.partialorder %v1477, 0.0
        %vm1511 = vcmp.gt.f32.partialorder %v1478, 0.0
        %vm1512 = vcmp.gt.f32.partialorder %v1479, 0.0
        %vm1513 = vcmp.gt.f32.partialorder %v1480, 0.0
        %vm1514 = vcmp.gt.f32.partialorder %v1481, 0.0
        %vm1515 = vcmp.gt.f32.partialorder %v1482, 0.0
        %vm1516 = vcmp.gt.f32.partialorder %v1483, 0.0
        %vm1517 = vcmp.gt.f32.partialorder %v1484, 0.0
        %vm1518 = vcmp.gt.f32.partialorder %v1485, 0.0
        %vm1519 = vcmp.gt.f32.partialorder %v1486, 0.0
        %vm1520 = vcmp.gt.f32.partialorder %v1487, 0.0
        %vm1521 = vcmp.gt.f32.partialorder %v1488, 0.0
        %vm1522 = vcmp.gt.f32.partialorder %v1489, 0.0
        %vm1523 = vcmp.gt.f32.partialorder %v1490, 0.0
        %vm1524 = vcmp.gt.f32.partialorder %v1491, 0.0
        %vm1525 = vcmp.gt.f32.partialorder %v1492, 0.0
        %v1526 = vstv %s1493
        %v1527 = vmul.f32 %v1526, %v1461
        %v1528 = vmul.f32 %v1526, %v1462
        %v1529 = vmul.f32 %v1526, %v1463
        %v1530 = vmul.f32 %v1526, %v1464
        %v1531 = vmul.f32 %v1526, %v1465
        %v1532 = vmul.f32 %v1526, %v1466
        %v1533 = vmul.f32 %v1526, %v1467
        %v1534 = vmul.f32 %v1526, %v1468
        %v1535 = vmul.f32 %v1526, %v1469
        %v1536 = vmul.f32 %v1526, %v1470
        %v1537 = vmul.f32 %v1526, %v1471
        %v1538 = vmul.f32 %v1526, %v1472
        %v1539 = vmul.f32 %v1526, %v1473
        %v1540 = vmul.f32 %v1526, %v1474
        %v1541 = vmul.f32 %v1526, %v1475
        %v1542 = vmul.f32 %v1526, %v1476
        %v1543 = vmul.f32 %v1526, %v1477
        %v1544 = vmul.f32 %v1526, %v1478
        %v1545 = vmul.f32 %v1526, %v1479
        %v1546 = vmul.f32 %v1526, %v1480
        %v1547 = vmul.f32 %v1526, %v1481
        %v1548 = vmul.f32 %v1526, %v1482
        %v1549 = vmul.f32 %v1526, %v1483
        %v1550 = vmul.f32 %v1526, %v1484
        %v1551 = vmul.f32 %v1526, %v1485
        %v1552 = vmul.f32 %v1526, %v1486
        %v1553 = vmul.f32 %v1526, %v1487
        %v1554 = vmul.f32 %v1526, %v1488
        %v1555 = vmul.f32 %v1526, %v1489
        %v1556 = vmul.f32 %v1526, %v1490
        %v1557 = vmul.f32 %v1526, %v1491
        %v1558 = vmul.f32 %v1526, %v1492
        %v1559 = vsel %vm1494, %v1461, %v1527
        %v1560 = vsel %vm1495, %v1462, %v1528
        %v1561 = vsel %vm1496, %v1463, %v1529
        %v1562 = vsel %vm1497, %v1464, %v1530
        %v1563 = vsel %vm1498, %v1465, %v1531
        %v1564 = vsel %vm1499, %v1466, %v1532
        %v1565 = vsel %vm1500, %v1467, %v1533
        %v1566 = vsel %vm1501, %v1468, %v1534
        %v1567 = vsel %vm1502, %v1469, %v1535
        %v1568 = vsel %vm1503, %v1470, %v1536
        %v1569 = vsel %vm1504, %v1471, %v1537
        %v1570 = vsel %vm1505, %v1472, %v1538
        %v1571 = vsel %vm1506, %v1473, %v1539
        %v1572 = vsel %vm1507, %v1474, %v1540
        %v1573 = vsel %vm1508, %v1475, %v1541
        %v1574 = vsel %vm1509, %v1476, %v1542
        %v1575 = vsel %vm1510, %v1477, %v1543
        %v1576 = vsel %vm1511, %v1478, %v1544
        %v1577 = vsel %vm1512, %v1479, %v1545
        %v1578 = vsel %vm1513, %v1480, %v1546
        %v1579 = vsel %vm1514, %v1481, %v1547
        %v1580 = vsel %vm1515, %v1482, %v1548
        %v1581 = vsel %vm1516, %v1483, %v1549
        %v1582 = vsel %vm1517, %v1484, %v1550
        %v1583 = vsel %vm1518, %v1485, %v1551
        %v1584 = vsel %vm1519, %v1486, %v1552
        %v1585 = vsel %vm1520, %v1487, %v1553
        %v1586 = vsel %vm1521, %v1488, %v1554
        %v1587 = vsel %vm1522, %v1489, %v1555
        %v1588 = vsel %vm1523, %v1490, %v1556
        %v1589 = vsel %vm1524, %v1491, %v1557
        %v1590 = vsel %vm1525, %v1492, %v1558
        %1591 = vst [vmem:[%s280] sm:$0xff] %v1559
        %1592 = vst [vmem:[%s280 + $0x8] sm:$0xff] %v1560
        %1593 = vst [vmem:[%s280 + $0x10] sm:$0xff] %v1561
        %1594 = vst [vmem:[%s280 + $0x18] sm:$0xff] %v1562
        %1595 = vst [vmem:[%s280 + $0x20] sm:$0xff] %v1563
        %1596 = vst [vmem:[%s280 + $0x28] sm:$0xff] %v1564
        %1597 = vst [vmem:[%s280 + $0x30] sm:$0xff] %v1565
        %1598 = vst [vmem:[%s280 + $0x38] sm:$0xff] %v1566
        %1599 = vst [vmem:[%s280 + $0x40] sm:$0xff] %v1567
        %1600 = vst [vmem:[%s280 + $0x48] sm:$0xff] %v1568
        %1601 = vst [vmem:[%s280 + $0x50] sm:$0xff] %v1569
        %1602 = vst [vmem:[%s280 + $0x58] sm:$0xff] %v1570
        %1603 = vst [vmem:[%s280 + $0x60] sm:$0xff] %v1571
        %1604 = vst [vmem:[%s280 + $0x68] sm:$0xff] %v1572
        %1605 = vst [vmem:[%s280 + $0x70] sm:$0xff] %v1573
        %1606 = vst [vmem:[%s280 + $0x78] sm:$0xff] %v1574
        %1607 = vst [vmem:[%s280 + $0x80] sm:$0xff] %v1575
        %1608 = vst [vmem:[%s280 + $0x88] sm:$0xff] %v1576
        %1609 = vst [vmem:[%s280 + $0x90] sm:$0xff] %v1577
        %1610 = vst [vmem:[%s280 + $0x98] sm:$0xff] %v1578
        %1611 = vst [vmem:[%s280 + $0xa0] sm:$0xff] %v1579
        %1612 = vst [vmem:[%s280 + $0xa8] sm:$0xff] %v1580
        %1613 = vst [vmem:[%s280 + $0xb0] sm:$0xff] %v1581
        %1614 = vst [vmem:[%s280 + $0xb8] sm:$0xff] %v1582
        %1615 = vst [vmem:[%s280 + $0xc0] sm:$0xff] %v1583
        %1616 = vst [vmem:[%s280 + $0xc8] sm:$0xff] %v1584
        %1617 = vst [vmem:[%s280 + $0xd0] sm:$0xff] %v1585
        %1618 = vst [vmem:[%s280 + $0xd8] sm:$0xff] %v1586
        %1619 = vst [vmem:[%s280 + $0xe0] sm:$0xff] %v1587
        %1620 = vst [vmem:[%s280 + $0xe8] sm:$0xff] %v1588
        %1621 = vst [vmem:[%s280 + $0xf0] sm:$0xff] %v1589
        %1622 = vst [vmem:[%s280 + $0xf8] sm:$0xff] %v1590
      $region48: #{gcn_forward.3} parent=39 // pred_fallthru
        _
      %s1623 = smul.u32 32, %s21
      %p1624 = scmp.lt.s32.totalorder %s1623, 63
      %s1625 = scalar_select %p1624, %s1623, 63
      %s1626 = smul.addr %s1625, 8
      %s1627 = scalar_lea.vmem %s5, %s1626
      // Predicated region
      $region49: #{gcn_forward.3} parent=39 // pred_check
        %p1628 = pneg %p164
      $region50: #{gcn_forward.3} parent=39 // pred_check_branch
        %1630 = sbr.rel (%p1628) target = $region52
      $region51: #{gcn_forward.3} parent=39 // pred_region
        %s1631 = smul.u32 32, %s21
      $region52: #{gcn_forward.3} parent=39 // pred_fallthru
        _
    $region40: #{gcn_forward.3} parent=5 // pred_fallthru
      _
    %p1632 = scmp.le.s32.totalorder 2, %s12
    // Predicated region
    $region53: #{gcn_forward.3} parent=5 // pred_check
      %p1633 = pneg %p1632
    $region54: #{gcn_forward.3} parent=5 // pred_check_branch
      %1635 = sbr.rel (%p1633) target = $region56
    $region55: #{gcn_forward.3} parent=5 // pred_region
      %s1636 = ssub.s32 %s12, 2
      // Predicated region
      $region57: #{gcn_forward.3} parent=55 // pred_check
        %p1637 = pneg %p170
      $region58: #{gcn_forward.3} parent=55 // pred_check_branch
        %1639 = sbr.rel (%p1637) target = $region60
      $region59: #{gcn_forward.3} parent=55 // pred_region
        %s1640 = smul.u32 32, %s23
        %p1641 = scmp.lt.s32.totalorder %s1640, 63
        %s1642 = scalar_select %p1641, %s1640, 63
        %s1643 = smul.addr %s1642, 8
        %s1644 = scalar_lea.vmem %s5, %s1643
      $region60: #{gcn_forward.3} parent=55 // pred_fallthru
        _
    $region56: #{gcn_forward.3} parent=5 // pred_fallthru
      _
  $region6: #{gcn_forward.3} parent=0 // loop_footer
    %s16 = sadd.s32 1, %s12
  $region7: #{gcn_forward.3} parent=0 // loop_footer_branch
    %11 = sbr.rel target = $region3
  $region8: #{gcn_forward.3} parent=0 // loop_exit
    _

</llo_original>
